<compile_context>
chip_gen: v5e
topology: v5e:2x2
jax: 0.10.0
libtpu: 0.0.40
codegen_flags: <defaults>
</compile_context>

<pallas_src>
import functools

import jax
import jax.numpy as jnp
from jax.experimental import pallas as pl
from jax.experimental.pallas import tpu as pltpu

LANES = 128  # pad all output/channel dims to one full lane width


def _round_up(x, m):
    return (x + m - 1) // m * m


# ----------------------------- Pallas kernels ------------------------------

def _conv_relu_pool_kernel(p_ref, w_ref, b_ref, o_ref):
    """Fused im2col-conv + bias + ReLU + 2x2/stride-2 max-pool for one image.

    p_ref: (1, 4, R, K)  pool-tap-grouped patches (R = pooled H*W)
    w_ref: (K, 128)      conv weight matrix, Cout zero-padded to 128 lanes
    b_ref: (1, 128)      bias, zero-padded
    o_ref: (1, R, 128)   pooled activation, lane-dense store
    """
    w = w_ref[...]
    b = b_ref[...]
    acc = None
    for q in range(4):  # static unroll over the 4 pool taps
        a = jnp.dot(p_ref[0, q], w, preferred_element_type=jnp.float32) + b
        a = jnp.maximum(a, 0.0)                       # ReLU before pool (torch)
        acc = a if acc is None else jnp.maximum(acc, a)
    o_ref[0] = acc.astype(o_ref.dtype)


def _fc_stack_kernel(h_ref, w1_ref, b1_ref, w2_ref, b2_ref, w3_ref, b3_ref,
                     o_ref):
    """fc1+ReLU -> fc2+ReLU -> fc3 fused; intermediates stay in VMEM/vregs."""
    a = jnp.dot(h_ref[...], w1_ref[...],
                preferred_element_type=jnp.float32) + b1_ref[...]
    a = jnp.maximum(a, 0.0)
    a = jnp.dot(a, w2_ref[...],
                preferred_element_type=jnp.float32) + b2_ref[...]
    a = jnp.maximum(a, 0.0)
    a = jnp.dot(a, w3_ref[...],
                preferred_element_type=jnp.float32) + b3_ref[...]
    o_ref[...] = a.astype(o_ref.dtype)


# ----------------------------- Pallas wrappers ------------------------------

def conv_relu_pool(patches, w, b):
    """patches: (N, 4, R, K) f32, w: (K, 128), b: (1, 128) -> (N, R, 128)."""
    n, _, r, k = patches.shape
    return pl.pallas_call(
        _conv_relu_pool_kernel,
        out_shape=jax.ShapeDtypeStruct((n, r, LANES), jnp.float32),
        grid=(n,),
        in_specs=[
            pl.BlockSpec((1, 4, r, k), lambda i: (i, 0, 0, 0)),
            pl.BlockSpec((k, LANES), lambda i: (0, 0)),
            pl.BlockSpec((1, LANES), lambda i: (0, 0)),
        ],
        out_specs=pl.BlockSpec((1, r, LANES), lambda i: (i, 0, 0)),
        compiler_params=pltpu.CompilerParams(
            dimension_semantics=("parallel",)),
    )(patches, w, b)


def fc_stack(h, w1, b1, w2, b2, w3, b3):
    """h: (N, K1) -> (N, 128) logits (lane-padded). Three Linear layers fused."""
    n, k1 = h.shape
    tile_b = min(256, _round_up(n, 8))        # keep blocks well under 16 MiB VMEM
    n_pad = _round_up(n, tile_b)
    if n_pad != n:
        h = jnp.pad(h, ((0, n_pad - n), (0, 0)))
    out = pl.pallas_call(
        _fc_stack_kernel,
        out_shape=jax.ShapeDtypeStruct((n_pad, LANES), jnp.float32),
        grid=(n_pad // tile_b,),
        in_specs=[
            pl.BlockSpec((tile_b, k1), lambda i: (i, 0)),
            pl.BlockSpec((k1, LANES), lambda i: (0, 0)),
            pl.BlockSpec((1, LANES), lambda i: (0, 0)),
            pl.BlockSpec((LANES, LANES), lambda i: (0, 0)),
            pl.BlockSpec((1, LANES), lambda i: (0, 0)),
            pl.BlockSpec((LANES, LANES), lambda i: (0, 0)),
            pl.BlockSpec((1, LANES), lambda i: (0, 0)),
        ],
        out_specs=pl.BlockSpec((tile_b, LANES), lambda i: (i, 0)),
        compiler_params=pltpu.CompilerParams(
            dimension_semantics=("parallel",)),
    )(h, w1, b1, w2, b2, w3, b3)
    return out[:n]


# ------------------------------- Glue (JAX) ---------------------------------

def _pool_grouped_patches(x, k):
    """NHWC -> pool-tap-grouped im2col patches.

    x: (N, H, W, C) -> (N, 4, PH*PW, k*k*C) where PH = (H-k+1)//2, and axis 1
    indexes the 4 taps of the subsequent 2x2/stride-2 max-pool. Patch column
    order is ((ky*k + kx)*C + c), matching _conv_weight_matrix row order.
    # TODO(synk): this im2col is still materialized in HBM by XLA; a fully
    # in-kernel shifted-accumulation conv would cut that traffic further.
    """
    n, h, w, c = x.shape
    oh, ow = h - k + 1, w - k + 1
    ph, pw = oh // 2, ow // 2
    cols = [x[:, ky:ky + oh, kx:kx + ow, :]
            for ky in range(k) for kx in range(k)]
    pat = jnp.concatenate(cols, axis=-1)                  # (N, OH, OW, k*k*C)
    pat = pat.reshape(n, ph, 2, pw, 2, k * k * c)
    pat = jnp.transpose(pat, (0, 2, 4, 1, 3, 5))          # (N, 2, 2, PH, PW, K)
    return pat.reshape(n, 4, ph * pw, k * k * c)


def _conv_weight_matrix(w_oihw):
    """(Cout,Cin,KH,KW) torch layout -> (KH*KW*Cin, 128) lane-padded matrix."""
    co, ci, kh, kw = w_oihw.shape
    wm = jnp.transpose(w_oihw, (2, 3, 1, 0)).reshape(kh * kw * ci, co)
    return jnp.pad(wm, ((0, 0), (0, LANES - co)))


def _pad_bias(b):
    return jnp.pad(b, (0, LANES - b.shape[0])).reshape(1, LANES)


# ------------------------------ Parameters ----------------------------------

def init_params(key, num_classes=10):
    ks = jax.random.split(key, 10)

    def u(k, shape, fan_in):
        bound = 1.0 / float(fan_in) ** 0.5
        return jax.random.uniform(k, shape, jnp.float32, -bound, bound)

    return {
        "w1": u(ks[0], (6, 1, 5, 5), 1 * 5 * 5),
        "b1": u(ks[1], (6,), 1 * 5 * 5),
        "w2": u(ks[2], (16, 6, 5, 5), 6 * 5 * 5),
        "b2": u(ks[3], (16,), 6 * 5 * 5),
        "fc1_w": u(ks[4], (120, 400), 400),
        "fc1_b": u(ks[5], (120,), 400),
        "fc2_w": u(ks[6], (84, 120), 120),
        "fc2_b": u(ks[7], (84,), 120),
        "fc3_w": u(ks[8], (num_classes, 84), 84),
        "fc3_b": u(ks[9], (num_classes,), 84),
    }


def prepare_params(params):
    """One-time re-layout of torch-style params into Pallas-ready matrices."""
    num_classes = params["fc3_w"].shape[0]

    # fc1: rows re-ordered to the ((ph*5+pw)*128 + c) flatten order produced
    # directly by the conv2 kernel output, with zero rows for padded channels.
    # This removes the NCHW flatten transpose and the channel slice entirely.
    w1 = params["fc1_w"].reshape(120, 16, 5, 5)           # (j, c, ph, pw)
    w1 = jnp.transpose(w1, (2, 3, 1, 0))                  # (ph, pw, c, j)
    w1p = jnp.zeros((5, 5, LANES, LANES), jnp.float32)
    w1p = w1p.at[:, :, :16, :120].set(w1).reshape(5 * 5 * LANES, LANES)

    w2p = jnp.zeros((LANES, LANES), jnp.float32)
    w2p = w2p.at[:120, :84].set(params["fc2_w"].T)
    w3p = jnp.zeros((LANES, LANES), jnp.float32)
    w3p = w3p.at[:84, :num_classes].set(params["fc3_w"].T)

    return {
        "c1w": _conv_weight_matrix(params["w1"]), "c1b": _pad_bias(params["b1"]),
        "c2w": _conv_weight_matrix(params["w2"]), "c2b": _pad_bias(params["b2"]),
        "fc1w": w1p, "fc1b": _pad_bias(params["fc1_b"]),
        "fc2w": w2p, "fc2b": _pad_bias(params["fc2_b"]),
        "fc3w": w3p, "fc3b": _pad_bias(params["fc3_b"]),
    }


# ------------------------------- Forward ------------------------------------

def lenet5_forward(x_nchw, prep, num_classes=10):
    """LeNet5 forward. x_nchw: (N, 1, 32, 32) float32 -> (N, num_classes)."""
    n = x_nchw.shape[0]
    x = jnp.transpose(x_nchw, (0, 2, 3, 1)).astype(jnp.float32)   # NHWC

    # Conv1 (1->6, k=5) + ReLU + MaxPool2x2, fused in one Pallas kernel.
    p = _pool_grouped_patches(x, 5)                    # (N, 4, 196, 25)
    h = conv_relu_pool(p, prep["c1w"], prep["c1b"])    # (N, 196, 128)
    h = h.reshape(n, 14, 14, LANES)[..., :6]           # (N, 14, 14, 6)

    # Conv2 (6->16, k=5) + ReLU + MaxPool2x2, fused.
    p = _pool_grouped_patches(h, 5)                    # (N, 4, 25, 150)
    h = conv_relu_pool(p, prep["c2w"], prep["c2b"])    # (N, 25, 128)

    # Flatten is a free reshape: fc1 weight rows were pre-ordered to this
    # (pooled-pixel-major, lane-padded-channel-minor) layout.
    h = h.reshape(n, 25 * LANES)                       # (N, 3200)

    out = fc_stack(h, prep["fc1w"], prep["fc1b"], prep["fc2w"], prep["fc2b"],
                   prep["fc3w"], prep["fc3b"])         # (N, 128)
    return out[:, :num_classes]


# --------------------------------- Main --------------------------------------

if __name__ == "__main__":
    key = jax.random.PRNGKey(0)
    k_x, k_p = jax.random.split(key)

    # LeNet5 requires 32x32 single-channel input (16*5*5 = 400 after features).
    x = jax.random.normal(k_x, (2, 1, 32, 32), dtype=jnp.float32)
    params = init_params(k_p, num_classes=10)
    prep = prepare_params(params)

    fwd = jax.jit(functools.partial(lenet5_forward, num_classes=10))
    logits = jax.block_until_ready(fwd(x, prep))

    assert logits.shape == (2, 10), logits.shape
    assert bool(jnp.all(jnp.isfinite(logits)))
    print("KERNEL_OK")
</pallas_src>

<mosaic_0001>
module attributes {stable_mosaic.version = 11 : i64} {
  func.func @_conv_relu_pool_kernel(%arg0: i32, %arg1: memref<1x4x196x25xf32, #tpu.memory_space<vmem>>, %arg2: memref<25x128xf32, #tpu.memory_space<vmem>>, %arg3: memref<1x128xf32, #tpu.memory_space<vmem>>, %arg4: memref<1x196x128xf32, #tpu.memory_space<vmem>>) attributes {dimension_semantics = [#tpu.dimension_semantics<parallel>], iteration_bounds = array<i64: 2>, scalar_prefetch = 0 : i64, scratch_operands = 0 : i64, tpu.core_type = #tpu.core_type<tc>, window_params = [{transform_indices = @transform_0, window_bounds = array<i64: 1, 4, 196, 25>}, {pipeline_mode = #tpu.pipeline_mode<synchronous>, transform_indices = @transform_1, window_bounds = array<i64: 25, 128>}, {pipeline_mode = #tpu.pipeline_mode<synchronous>, transform_indices = @transform_2, window_bounds = array<i64: 1, 128>}, {transform_indices = @transform_3, window_bounds = array<i64: 1, 196, 128>}]} {
    %c0 = arith.constant 0 : index
    %c0_0 = arith.constant 0 : index
    %0 = vector.load %arg2[%c0, %c0_0] : memref<25x128xf32, #tpu.memory_space<vmem>>, vector<25x128xf32>
    %c0_1 = arith.constant 0 : index
    %c0_2 = arith.constant 0 : index
    %1 = vector.load %arg3[%c0_1, %c0_2] : memref<1x128xf32, #tpu.memory_space<vmem>>, vector<1x128xf32>
    %c0_3 = arith.constant 0 : index
    %c0_4 = arith.constant 0 : index
    %c0_5 = arith.constant 0 : index
    %c0_6 = arith.constant 0 : index
    %2 = vector.load %arg1[%c0_3, %c0_4, %c0_5, %c0_6] : memref<1x4x196x25xf32, #tpu.memory_space<vmem>>, vector<1x1x196x25xf32>
    %3 = vector.shape_cast %2 : vector<1x1x196x25xf32> to vector<196x25xf32>
    %cst = arith.constant dense<0.000000e+00> : vector<196x128xf32>
    %4 = tpu.matmul %3, %0, %cst {dimension_numbers = #tpu.dot_dimension_numbers<[1], [0], [0], [1], [0, 0, 1, 1], [], []>} : vector<196x25xf32>, vector<25x128xf32>, vector<196x128xf32> -> vector<196x128xf32>
    %5 = vector.broadcast %1 : vector<1x128xf32> to vector<196x128xf32>
    %6 = arith.addf %4, %5 : vector<196x128xf32>
    %cst_7 = arith.constant 0.000000e+00 : f32
    %7 = vector.broadcast %cst_7 : f32 to vector<196x128xf32>
    %8 = arith.maximumf %6, %7 : vector<196x128xf32>
    %c0_8 = arith.constant 0 : index
    %c1 = arith.constant 1 : index
    %c0_9 = arith.constant 0 : index
    %c0_10 = arith.constant 0 : index
    %9 = vector.load %arg1[%c0_8, %c1, %c0_9, %c0_10] : memref<1x4x196x25xf32, #tpu.memory_space<vmem>>, vector<1x1x196x25xf32>
    %10 = vector.shape_cast %9 : vector<1x1x196x25xf32> to vector<196x25xf32>
    %cst_11 = arith.constant dense<0.000000e+00> : vector<196x128xf32>
    %11 = tpu.matmul %10, %0, %cst_11 {dimension_numbers = #tpu.dot_dimension_numbers<[1], [0], [0], [1], [0, 0, 1, 1], [], []>} : vector<196x25xf32>, vector<25x128xf32>, vector<196x128xf32> -> vector<196x128xf32>
    %12 = vector.broadcast %1 : vector<1x128xf32> to vector<196x128xf32>
    %13 = arith.addf %11, %12 : vector<196x128xf32>
    %cst_12 = arith.constant 0.000000e+00 : f32
    %14 = vector.broadcast %cst_12 : f32 to vector<196x128xf32>
    %15 = arith.maximumf %13, %14 : vector<196x128xf32>
    %16 = arith.maximumf %8, %15 : vector<196x128xf32>
    %c0_13 = arith.constant 0 : index
    %c2 = arith.constant 2 : index
    %c0_14 = arith.constant 0 : index
    %c0_15 = arith.constant 0 : index
    %17 = vector.load %arg1[%c0_13, %c2, %c0_14, %c0_15] : memref<1x4x196x25xf32, #tpu.memory_space<vmem>>, vector<1x1x196x25xf32>
    %18 = vector.shape_cast %17 : vector<1x1x196x25xf32> to vector<196x25xf32>
    %cst_16 = arith.constant dense<0.000000e+00> : vector<196x128xf32>
    %19 = tpu.matmul %18, %0, %cst_16 {dimension_numbers = #tpu.dot_dimension_numbers<[1], [0], [0], [1], [0, 0, 1, 1], [], []>} : vector<196x25xf32>, vector<25x128xf32>, vector<196x128xf32> -> vector<196x128xf32>
    %20 = vector.broadcast %1 : vector<1x128xf32> to vector<196x128xf32>
    %21 = arith.addf %19, %20 : vector<196x128xf32>
    %cst_17 = arith.constant 0.000000e+00 : f32
    %22 = vector.broadcast %cst_17 : f32 to vector<196x128xf32>
    %23 = arith.maximumf %21, %22 : vector<196x128xf32>
    %24 = arith.maximumf %16, %23 : vector<196x128xf32>
    %c0_18 = arith.constant 0 : index
    %c3 = arith.constant 3 : index
    %c0_19 = arith.constant 0 : index
    %c0_20 = arith.constant 0 : index
    %25 = vector.load %arg1[%c0_18, %c3, %c0_19, %c0_20] : memref<1x4x196x25xf32, #tpu.memory_space<vmem>>, vector<1x1x196x25xf32>
    %26 = vector.shape_cast %25 : vector<1x1x196x25xf32> to vector<196x25xf32>
    %cst_21 = arith.constant dense<0.000000e+00> : vector<196x128xf32>
    %27 = tpu.matmul %26, %0, %cst_21 {dimension_numbers = #tpu.dot_dimension_numbers<[1], [0], [0], [1], [0, 0, 1, 1], [], []>} : vector<196x25xf32>, vector<25x128xf32>, vector<196x128xf32> -> vector<196x128xf32>
    %28 = vector.broadcast %1 : vector<1x128xf32> to vector<196x128xf32>
    %29 = arith.addf %27, %28 : vector<196x128xf32>
    %cst_22 = arith.constant 0.000000e+00 : f32
    %30 = vector.broadcast %cst_22 : f32 to vector<196x128xf32>
    %31 = arith.maximumf %29, %30 : vector<196x128xf32>
    %32 = arith.maximumf %24, %31 : vector<196x128xf32>
    %c0_23 = arith.constant 0 : index
    %c0_24 = arith.constant 0 : index
    %c0_25 = arith.constant 0 : index
    %33 = vector.load %arg4[%c0_23, %c0_24, %c0_25] : memref<1x196x128xf32, #tpu.memory_space<vmem>>, vector<1x196x128xf32>
    %34 = vector.shape_cast %33 : vector<1x196x128xf32> to vector<196x128xf32>
    %35 = vector.shape_cast %32 : vector<196x128xf32> to vector<1x196x128xf32>
    tpu.vector_store %arg4[%c0_23, %c0_24, %c0_25], %35 {strides = array<i32>} : memref<1x196x128xf32, #tpu.memory_space<vmem>>, vector<1x196x128xf32>,
    return
  }
  func.func @transform_0(%arg0: i32) -> (i32, i32, i32, i32) {
    %c0_i32 = arith.constant 0 : i32
    %c0_i32_0 = arith.constant 0 : i32
    %c0_i32_1 = arith.constant 0 : i32
    %c0_i32_2 = arith.constant 0 : i32
    return %arg0, %c0_i32, %c0_i32_0, %c0_i32_1 : i32, i32, i32, i32
  }
  func.func @transform_1(%arg0: i32) -> (i32, i32) {
    %c0_i32 = arith.constant 0 : i32
    %c0_i32_0 = arith.constant 0 : i32
    %c0_i32_1 = arith.constant 0 : i32
    return %c0_i32, %c0_i32_0 : i32, i32
  }
  func.func @transform_2(%arg0: i32) -> (i32, i32) {
    %c0_i32 = arith.constant 0 : i32
    %c0_i32_0 = arith.constant 0 : i32
    %c0_i32_1 = arith.constant 0 : i32
    return %c0_i32, %c0_i32_0 : i32, i32
  }
  func.func @transform_3(%arg0: i32) -> (i32, i32, i32) {
    %c0_i32 = arith.constant 0 : i32
    %c0_i32_0 = arith.constant 0 : i32
    %c0_i32_1 = arith.constant 0 : i32
    return %arg0, %c0_i32, %c0_i32_0 : i32, i32, i32
  }
}

module attributes {stable_mosaic.version = 11 : i64} {
  func.func @_conv_relu_pool_kernel(%arg0: i32, %arg1: memref<1x4x25x150xf32, #tpu.memory_space<vmem>>, %arg2: memref<150x128xf32, #tpu.memory_space<vmem>>, %arg3: memref<1x128xf32, #tpu.memory_space<vmem>>, %arg4: memref<1x25x128xf32, #tpu.memory_space<vmem>>) attributes {dimension_semantics = [#tpu.dimension_semantics<parallel>], iteration_bounds = array<i64: 2>, scalar_prefetch = 0 : i64, scratch_operands = 0 : i64, tpu.core_type = #tpu.core_type<tc>, window_params = [{transform_indices = @transform_0, window_bounds = array<i64: 1, 4, 25, 150>}, {pipeline_mode = #tpu.pipeline_mode<synchronous>, transform_indices = @transform_1, window_bounds = array<i64: 150, 128>}, {pipeline_mode = #tpu.pipeline_mode<synchronous>, transform_indices = @transform_2, window_bounds = array<i64: 1, 128>}, {transform_indices = @transform_3, window_bounds = array<i64: 1, 25, 128>}]} {
    %c0 = arith.constant 0 : index
    %c0_0 = arith.constant 0 : index
    %0 = vector.load %arg2[%c0, %c0_0] : memref<150x128xf32, #tpu.memory_space<vmem>>, vector<150x128xf32>
    %c0_1 = arith.constant 0 : index
    %c0_2 = arith.constant 0 : index
    %1 = vector.load %arg3[%c0_1, %c0_2] : memref<1x128xf32, #tpu.memory_space<vmem>>, vector<1x128xf32>
    %c0_3 = arith.constant 0 : index
    %c0_4 = arith.constant 0 : index
    %c0_5 = arith.constant 0 : index
    %c0_6 = arith.constant 0 : index
    %2 = vector.load %arg1[%c0_3, %c0_4, %c0_5, %c0_6] : memref<1x4x25x150xf32, #tpu.memory_space<vmem>>, vector<1x1x25x150xf32>
    %3 = vector.shape_cast %2 : vector<1x1x25x150xf32> to vector<25x150xf32>
    %cst = arith.constant dense<0.000000e+00> : vector<25x128xf32>
    %4 = tpu.matmul %3, %0, %cst {dimension_numbers = #tpu.dot_dimension_numbers<[1], [0], [0], [1], [0, 0, 1, 1], [], []>} : vector<25x150xf32>, vector<150x128xf32>, vector<25x128xf32> -> vector<25x128xf32>
    %5 = vector.broadcast %1 : vector<1x128xf32> to vector<25x128xf32>
    %6 = arith.addf %4, %5 : vector<25x128xf32>
    %cst_7 = arith.constant 0.000000e+00 : f32
    %7 = vector.broadcast %cst_7 : f32 to vector<25x128xf32>
    %8 = arith.maximumf %6, %7 : vector<25x128xf32>
    %c0_8 = arith.constant 0 : index
    %c1 = arith.constant 1 : index
    %c0_9 = arith.constant 0 : index
    %c0_10 = arith.constant 0 : index
    %9 = vector.load %arg1[%c0_8, %c1, %c0_9, %c0_10] : memref<1x4x25x150xf32, #tpu.memory_space<vmem>>, vector<1x1x25x150xf32>
    %10 = vector.shape_cast %9 : vector<1x1x25x150xf32> to vector<25x150xf32>
    %cst_11 = arith.constant dense<0.000000e+00> : vector<25x128xf32>
    %11 = tpu.matmul %10, %0, %cst_11 {dimension_numbers = #tpu.dot_dimension_numbers<[1], [0], [0], [1], [0, 0, 1, 1], [], []>} : vector<25x150xf32>, vector<150x128xf32>, vector<25x128xf32> -> vector<25x128xf32>
    %12 = vector.broadcast %1 : vector<1x128xf32> to vector<25x128xf32>
    %13 = arith.addf %11, %12 : vector<25x128xf32>
    %cst_12 = arith.constant 0.000000e+00 : f32
    %14 = vector.broadcast %cst_12 : f32 to vector<25x128xf32>
    %15 = arith.maximumf %13, %14 : vector<25x128xf32>
    %16 = arith.maximumf %8, %15 : vector<25x128xf32>
    %c0_13 = arith.constant 0 : index
    %c2 = arith.constant 2 : index
    %c0_14 = arith.constant 0 : index
    %c0_15 = arith.constant 0 : index
    %17 = vector.load %arg1[%c0_13, %c2, %c0_14, %c0_15] : memref<1x4x25x150xf32, #tpu.memory_space<vmem>>, vector<1x1x25x150xf32>
    %18 = vector.shape_cast %17 : vector<1x1x25x150xf32> to vector<25x150xf32>
    %cst_16 = arith.constant dense<0.000000e+00> : vector<25x128xf32>
    %19 = tpu.matmul %18, %0, %cst_16 {dimension_numbers = #tpu.dot_dimension_numbers<[1], [0], [0], [1], [0, 0, 1, 1], [], []>} : vector<25x150xf32>, vector<150x128xf32>, vector<25x128xf32> -> vector<25x128xf32>
    %20 = vector.broadcast %1 : vector<1x128xf32> to vector<25x128xf32>
    %21 = arith.addf %19, %20 : vector<25x128xf32>
    %cst_17 = arith.constant 0.000000e+00 : f32
    %22 = vector.broadcast %cst_17 : f32 to vector<25x128xf32>
    %23 = arith.maximumf %21, %22 : vector<25x128xf32>
    %24 = arith.maximumf %16, %23 : vector<25x128xf32>
    %c0_18 = arith.constant 0 : index
    %c3 = arith.constant 3 : index
    %c0_19 = arith.constant 0 : index
    %c0_20 = arith.constant 0 : index
    %25 = vector.load %arg1[%c0_18, %c3, %c0_19, %c0_20] : memref<1x4x25x150xf32, #tpu.memory_space<vmem>>, vector<1x1x25x150xf32>
    %26 = vector.shape_cast %25 : vector<1x1x25x150xf32> to vector<25x150xf32>
    %cst_21 = arith.constant dense<0.000000e+00> : vector<25x128xf32>
    %27 = tpu.matmul %26, %0, %cst_21 {dimension_numbers = #tpu.dot_dimension_numbers<[1], [0], [0], [1], [0, 0, 1, 1], [], []>} : vector<25x150xf32>, vector<150x128xf32>, vector<25x128xf32> -> vector<25x128xf32>
    %28 = vector.broadcast %1 : vector<1x128xf32> to vector<25x128xf32>
    %29 = arith.addf %27, %28 : vector<25x128xf32>
    %cst_22 = arith.constant 0.000000e+00 : f32
    %30 = vector.broadcast %cst_22 : f32 to vector<25x128xf32>
    %31 = arith.maximumf %29, %30 : vector<25x128xf32>
    %32 = arith.maximumf %24, %31 : vector<25x128xf32>
    %c0_23 = arith.constant 0 : index
    %c0_24 = arith.constant 0 : index
    %c0_25 = arith.constant 0 : index
    %33 = vector.load %arg4[%c0_23, %c0_24, %c0_25] : memref<1x25x128xf32, #tpu.memory_space<vmem>>, vector<1x25x128xf32>
    %34 = vector.shape_cast %33 : vector<1x25x128xf32> to vector<25x128xf32>
    %35 = vector.shape_cast %32 : vector<25x128xf32> to vector<1x25x128xf32>
    tpu.vector_store %arg4[%c0_23, %c0_24, %c0_25], %35 {strides = array<i32>} : memref<1x25x128xf32, #tpu.memory_space<vmem>>, vector<1x25x128xf32>,
    return
  }
  func.func @transform_0(%arg0: i32) -> (i32, i32, i32, i32) {
    %c0_i32 = arith.constant 0 : i32
    %c0_i32_0 = arith.constant 0 : i32
    %c0_i32_1 = arith.constant 0 : i32
    %c0_i32_2 = arith.constant 0 : i32
    return %arg0, %c0_i32, %c0_i32_0, %c0_i32_1 : i32, i32, i32, i32
  }
  func.func @transform_1(%arg0: i32) -> (i32, i32) {
    %c0_i32 = arith.constant 0 : i32
    %c0_i32_0 = arith.constant 0 : i32
    %c0_i32_1 = arith.constant 0 : i32
    return %c0_i32, %c0_i32_0 : i32, i32
  }
  func.func @transform_2(%arg0: i32) -> (i32, i32) {
    %c0_i32 = arith.constant 0 : i32
    %c0_i32_0 = arith.constant 0 : i32
    %c0_i32_1 = arith.constant 0 : i32
    return %c0_i32, %c0_i32_0 : i32, i32
  }
  func.func @transform_3(%arg0: i32) -> (i32, i32, i32) {
    %c0_i32 = arith.constant 0 : i32
    %c0_i32_0 = arith.constant 0 : i32
    %c0_i32_1 = arith.constant 0 : i32
    return %arg0, %c0_i32, %c0_i32_0 : i32, i32, i32
  }
}

module attributes {stable_mosaic.version = 11 : i64} {
  func.func @_fc_stack_kernel(%arg0: i32, %arg1: memref<8x3200xf32, #tpu.memory_space<vmem>>, %arg2: memref<3200x128xf32, #tpu.memory_space<vmem>>, %arg3: memref<1x128xf32, #tpu.memory_space<vmem>>, %arg4: memref<128x128xf32, #tpu.memory_space<vmem>>, %arg5: memref<1x128xf32, #tpu.memory_space<vmem>>, %arg6: memref<128x128xf32, #tpu.memory_space<vmem>>, %arg7: memref<1x128xf32, #tpu.memory_space<vmem>>, %arg8: memref<8x128xf32, #tpu.memory_space<vmem>>) attributes {dimension_semantics = [#tpu.dimension_semantics<parallel>], iteration_bounds = array<i64: 1>, scalar_prefetch = 0 : i64, scratch_operands = 0 : i64, tpu.core_type = #tpu.core_type<tc>, window_params = [{transform_indices = @transform_0, window_bounds = array<i64: 8, 3200>}, {pipeline_mode = #tpu.pipeline_mode<synchronous>, transform_indices = @transform_1, window_bounds = array<i64: 3200, 128>}, {pipeline_mode = #tpu.pipeline_mode<synchronous>, transform_indices = @transform_2, window_bounds = array<i64: 1, 128>}, {pipeline_mode = #tpu.pipeline_mode<synchronous>, transform_indices = @transform_3, window_bounds = array<i64: 128, 128>}, {pipeline_mode = #tpu.pipeline_mode<synchronous>, transform_indices = @transform_4, window_bounds = array<i64: 1, 128>}, {pipeline_mode = #tpu.pipeline_mode<synchronous>, transform_indices = @transform_5, window_bounds = array<i64: 128, 128>}, {pipeline_mode = #tpu.pipeline_mode<synchronous>, transform_indices = @transform_6, window_bounds = array<i64: 1, 128>}, {transform_indices = @transform_7, window_bounds = array<i64: 8, 128>}]} {
    %c0 = arith.constant 0 : index
    %c0_0 = arith.constant 0 : index
    %0 = vector.load %arg1[%c0, %c0_0] : memref<8x3200xf32, #tpu.memory_space<vmem>>, vector<8x3200xf32>
    %c0_1 = arith.constant 0 : index
    %c0_2 = arith.constant 0 : index
    %1 = vector.load %arg2[%c0_1, %c0_2] : memref<3200x128xf32, #tpu.memory_space<vmem>>, vector<3200x128xf32>
    %cst = arith.constant dense<0.000000e+00> : vector<8x128xf32>
    %2 = tpu.matmul %0, %1, %cst {dimension_numbers = #tpu.dot_dimension_numbers<[1], [0], [0], [1], [0, 0, 1, 1], [], []>} : vector<8x3200xf32>, vector<3200x128xf32>, vector<8x128xf32> -> vector<8x128xf32>
    %c0_3 = arith.constant 0 : index
    %c0_4 = arith.constant 0 : index
    %3 = vector.load %arg3[%c0_3, %c0_4] : memref<1x128xf32, #tpu.memory_space<vmem>>, vector<1x128xf32>
    %4 = vector.broadcast %3 : vector<1x128xf32> to vector<8x128xf32>
    %5 = arith.addf %2, %4 : vector<8x128xf32>
    %cst_5 = arith.constant 0.000000e+00 : f32
    %6 = vector.broadcast %cst_5 : f32 to vector<8x128xf32>
    %7 = arith.maximumf %5, %6 : vector<8x128xf32>
    %c0_6 = arith.constant 0 : index
    %c0_7 = arith.constant 0 : index
    %8 = vector.load %arg4[%c0_6, %c0_7] : memref<128x128xf32, #tpu.memory_space<vmem>>, vector<128x128xf32>
    %cst_8 = arith.constant dense<0.000000e+00> : vector<8x128xf32>
    %9 = tpu.matmul %7, %8, %cst_8 {dimension_numbers = #tpu.dot_dimension_numbers<[1], [0], [0], [1], [0, 0, 1, 1], [], []>} : vector<8x128xf32>, vector<128x128xf32>, vector<8x128xf32> -> vector<8x128xf32>
    %c0_9 = arith.constant 0 : index
    %c0_10 = arith.constant 0 : index
    %10 = vector.load %arg5[%c0_9, %c0_10] : memref<1x128xf32, #tpu.memory_space<vmem>>, vector<1x128xf32>
    %11 = vector.broadcast %10 : vector<1x128xf32> to vector<8x128xf32>
    %12 = arith.addf %9, %11 : vector<8x128xf32>
    %cst_11 = arith.constant 0.000000e+00 : f32
    %13 = vector.broadcast %cst_11 : f32 to vector<8x128xf32>
    %14 = arith.maximumf %12, %13 : vector<8x128xf32>
    %c0_12 = arith.constant 0 : index
    %c0_13 = arith.constant 0 : index
    %15 = vector.load %arg6[%c0_12, %c0_13] : memref<128x128xf32, #tpu.memory_space<vmem>>, vector<128x128xf32>
    %cst_14 = arith.constant dense<0.000000e+00> : vector<8x128xf32>
    %16 = tpu.matmul %14, %15, %cst_14 {dimension_numbers = #tpu.dot_dimension_numbers<[1], [0], [0], [1], [0, 0, 1, 1], [], []>} : vector<8x128xf32>, vector<128x128xf32>, vector<8x128xf32> -> vector<8x128xf32>
    %c0_15 = arith.constant 0 : index
    %c0_16 = arith.constant 0 : index
    %17 = vector.load %arg7[%c0_15, %c0_16] : memref<1x128xf32, #tpu.memory_space<vmem>>, vector<1x128xf32>
    %18 = vector.broadcast %17 : vector<1x128xf32> to vector<8x128xf32>
    %19 = arith.addf %16, %18 : vector<8x128xf32>
    %c0_17 = arith.constant 0 : index
    %c0_18 = arith.constant 0 : index
    %20 = vector.load %arg8[%c0_17, %c0_18] : memref<8x128xf32, #tpu.memory_space<vmem>>, vector<8x128xf32>
    tpu.vector_store %arg8[%c0_17, %c0_18], %19 {strides = array<i32>} : memref<8x128xf32, #tpu.memory_space<vmem>>, vector<8x128xf32>,
    return
  }
  func.func @transform_0(%arg0: i32) -> (i32, i32) {
    %c0_i32 = arith.constant 0 : i32
    %c0_i32_0 = arith.constant 0 : i32
    return %arg0, %c0_i32 : i32, i32
  }
  func.func @transform_1(%arg0: i32) -> (i32, i32) {
    %c0_i32 = arith.constant 0 : i32
    %c0_i32_0 = arith.constant 0 : i32
    %c0_i32_1 = arith.constant 0 : i32
    return %c0_i32, %c0_i32_0 : i32, i32
  }
  func.func @transform_2(%arg0: i32) -> (i32, i32) {
    %c0_i32 = arith.constant 0 : i32
    %c0_i32_0 = arith.constant 0 : i32
    %c0_i32_1 = arith.constant 0 : i32
    return %c0_i32, %c0_i32_0 : i32, i32
  }
  func.func @transform_3(%arg0: i32) -> (i32, i32) {
    %c0_i32 = arith.constant 0 : i32
    %c0_i32_0 = arith.constant 0 : i32
    %c0_i32_1 = arith.constant 0 : i32
    return %c0_i32, %c0_i32_0 : i32, i32
  }
  func.func @transform_4(%arg0: i32) -> (i32, i32) {
    %c0_i32 = arith.constant 0 : i32
    %c0_i32_0 = arith.constant 0 : i32
    %c0_i32_1 = arith.constant 0 : i32
    return %c0_i32, %c0_i32_0 : i32, i32
  }
  func.func @transform_5(%arg0: i32) -> (i32, i32) {
    %c0_i32 = arith.constant 0 : i32
    %c0_i32_0 = arith.constant 0 : i32
    %c0_i32_1 = arith.constant 0 : i32
    return %c0_i32, %c0_i32_0 : i32, i32
  }
  func.func @transform_6(%arg0: i32) -> (i32, i32) {
    %c0_i32 = arith.constant 0 : i32
    %c0_i32_0 = arith.constant 0 : i32
    %c0_i32_1 = arith.constant 0 : i32
    return %c0_i32, %c0_i32_0 : i32, i32
  }
  func.func @transform_7(%arg0: i32) -> (i32, i32) {
    %c0_i32 = arith.constant 0 : i32
    %c0_i32_0 = arith.constant 0 : i32
    return %arg0, %c0_i32 : i32, i32
  }
}

</mosaic_0001>

<llo_original>
// kernel: lenet5_forward.3
$region0: #{lenet5_forward.3}
  #allocation0 [shape = 'u32[]', space=smem, size = 0x4, offset = 0x4, fixed_abs, tag = 'smem constant byte address 0x4 - core index']
  #allocation1 [shape = 'u32[72,128]{1,0:T(1,128)}', space=vmem, size = 0x9000, scoped, tag = 'internal scratch']
  %s0 = inlined_call_operand.vmem [shape: f32[2,4,196,25], index: 0, kind: input, shape index: {}]
  %s1 = inlined_call_operand.vmem [shape: f32[25,128], index: 1, kind: input, shape index: {}]
  %s2 = inlined_call_operand.vmem [shape: f32[1,128], index: 2, kind: input, shape index: {}]
  %s3 = inlined_call_operand.vmem [shape: f32[2,196,128], index: 3, kind: output, shape index: {}]
  %s4 = sld [smem:[#allocation0]]
  $region45: #{lenet5_forward.3} parent=0
    _
  %s6 = ssub.s32 1, %s4
  %s7 = scalar_select 0, %s6, %s4
  loop: start=0, step=1, limit=4
  $region2: #{lenet5_forward.3} parent=0 // loop_pre_header
    _
  $region3: #{lenet5_forward.3} parent=0 // loop_header
    %s9 = sphi 0, %s13
    %p10 = scmp.ge.s32.totalorder %s9, 4
    %s19 = sphi 0, %s21
    %s22 = sphi 0, %s19
    %s23 = sphi 0, %s22
    %s39 = sphi 0, %s23
    %s43 = sphi 0, %s43
    %s45 = sphi 0, %s43
    %s46 = sphi 0, %s45
    %s60 = sphi 0, %s46
    %s64 = sphi 0, %s64
    %s66 = sphi 0, %s64
    %s67 = sphi 0, %s66
    %s81 = sphi 0, %s67
    %s87 = sphi 0, %s89
    %s90 = sphi 0, %s87
    %s91 = sphi 0, %s90
    %s107 = sphi 0, %s91
  $region4: #{lenet5_forward.3} parent=0 // loop_header_branch
    %12 = sbr.rel (%p10) target = $region8
  $region5: #{lenet5_forward.3} parent=0 // loop_body
    %s14 = ssub.s32 %s9, 1
    %s15 = ssub.s32 %s9, 2
    %s16 = sadd.s32 %s9, 1
    %s17 = ssub.s32 %s9, %s16
    %p18 = scmp.eq.s32.totalorder %s17, 0
    %s20 = sadd.s32 %s19, 1
    %s21 = scalar_select %p18, %s19, %s20
    %p24 = pneg %p18
    %p25 = scmp.eq.s32.totalorder %s9, 1
    %p26 = por %p24, %p25
    %p27 = scmp.ne.s32.totalorder %s19, %s22
    %p28 = scmp.eq.s32.totalorder %s9, 0
    %p29 = por %p27, %p28
    %p30 = scmp.ne.s32.totalorder %s19, %s22
    %p31 = scmp.eq.s32.totalorder %s14, 1
    %p32 = por %p30, %p31
    %p33 = scmp.ne.s32.totalorder %s22, %s23
    %p34 = scmp.eq.s32.totalorder %s14, 0
    %p35 = por %p33, %p34
    %p36 = scmp.ne.s32.totalorder %s22, %s23
    %p37 = scmp.eq.s32.totalorder %s15, 1
    %p38 = por %p36, %p37
    %p40 = scmp.ne.s32.totalorder %s23, %s39
    %p41 = scmp.eq.s32.totalorder %s15, 0
    %p42 = por %p40, %p41
    %s44 = sadd.s32 %s43, 1
    %p47 = scmp.eq.s32.totalorder %s9, 1
    %p48 = scmp.ne.s32.totalorder %s43, %s45
    %p49 = scmp.eq.s32.totalorder %s9, 0
    %p50 = por %p48, %p49
    %p51 = scmp.ne.s32.totalorder %s43, %s45
    %p52 = scmp.eq.s32.totalorder %s14, 1
    %p53 = por %p51, %p52
    %p54 = scmp.ne.s32.totalorder %s45, %s46
    %p55 = scmp.eq.s32.totalorder %s14, 0
    %p56 = por %p54, %p55
    %p57 = scmp.ne.s32.totalorder %s45, %s46
    %p58 = scmp.eq.s32.totalorder %s15, 1
    %p59 = por %p57, %p58
    %p61 = scmp.ne.s32.totalorder %s46, %s60
    %p62 = scmp.eq.s32.totalorder %s15, 0
    %p63 = por %p61, %p62
    %s65 = sadd.s32 %s64, 1
    %p68 = scmp.eq.s32.totalorder %s9, 1
    %p69 = scmp.ne.s32.totalorder %s64, %s66
    %p70 = scmp.eq.s32.totalorder %s9, 0
    %p71 = por %p69, %p70
    %p72 = scmp.ne.s32.totalorder %s64, %s66
    %p73 = scmp.eq.s32.totalorder %s14, 1
    %p74 = por %p72, %p73
    %p75 = scmp.ne.s32.totalorder %s66, %s67
    %p76 = scmp.eq.s32.totalorder %s14, 0
    %p77 = por %p75, %p76
    %p78 = scmp.ne.s32.totalorder %s66, %s67
    %p79 = scmp.eq.s32.totalorder %s15, 1
    %p80 = por %p78, %p79
    %p82 = scmp.ne.s32.totalorder %s67, %s81
    %p83 = scmp.eq.s32.totalorder %s15, 0
    %p84 = por %p82, %p83
    %s85 = ssub.s32 %s9, %s16
    %p86 = scmp.eq.s32.totalorder %s85, 0
    %s88 = sadd.s32 %s87, 1
    %s89 = scalar_select %p86, %s87, %s88
    %p92 = pneg %p86
    %p93 = scmp.eq.s32.totalorder %s9, 1
    %p94 = por %p92, %p93
    %p95 = scmp.ne.s32.totalorder %s87, %s90
    %p96 = scmp.eq.s32.totalorder %s9, 0
    %p97 = por %p95, %p96
    %p98 = scmp.ne.s32.totalorder %s87, %s90
    %p99 = scmp.eq.s32.totalorder %s14, 1
    %p100 = por %p98, %p99
    %p101 = scmp.ne.s32.totalorder %s90, %s91
    %p102 = scmp.eq.s32.totalorder %s14, 0
    %p103 = por %p101, %p102
    %p104 = scmp.ne.s32.totalorder %s90, %s91
    %p105 = scmp.eq.s32.totalorder %s15, 1
    %p106 = por %p104, %p105
    %p108 = scmp.ne.s32.totalorder %s91, %s107
    %p109 = scmp.eq.s32.totalorder %s15, 0
    %p110 = por %p108, %p109
    %p111 = scmp.le.s32.totalorder 1, %s9
    %p112 = scmp.lt.s32.totalorder %s9, 3
    %p113 = pnand %p111, %p112
    %p114 = pneg %p113
    // Predicated region
    $region9: #{lenet5_forward.3} parent=5 // pred_check
      _
    $region10: #{lenet5_forward.3} parent=5 // pred_check_branch
      %116 = sbr.rel (%p113) target = $region12
    $region11: #{lenet5_forward.3} parent=5 // pred_region
      %s117 = ssub.s32 %s9, 1
      // Predicated region
      $region13: #{lenet5_forward.3} parent=11 // pred_check
        %p118 = pneg %p56
      $region14: #{lenet5_forward.3} parent=11 // pred_check_branch
        %120 = sbr.rel (%p118) target = $region16
      $region15: #{lenet5_forward.3} parent=11 // pred_region
        _
      $region16: #{lenet5_forward.3} parent=11 // pred_fallthru
        _
      // Predicated region
      $region17: #{lenet5_forward.3} parent=11 // pred_check
        %p121 = pneg %p77
      $region18: #{lenet5_forward.3} parent=11 // pred_check_branch
        %123 = sbr.rel (%p121) target = $region20
      $region19: #{lenet5_forward.3} parent=11 // pred_region
        _
      $region20: #{lenet5_forward.3} parent=11 // pred_fallthru
        _
    $region12: #{lenet5_forward.3} parent=5 // pred_fallthru
      _
    %p124 = scmp.lt.s32.totalorder %s9, 2
    // Predicated region
    $region21: #{lenet5_forward.3} parent=5 // pred_check
      %p125 = pneg %p124
    $region22: #{lenet5_forward.3} parent=5 // pred_check_branch
      %127 = sbr.rel (%p125) target = $region24
    $region23: #{lenet5_forward.3} parent=5 // pred_region
      // Predicated region
      $region25: #{lenet5_forward.3} parent=23 // pred_check
        %p128 = pneg %p29
      $region26: #{lenet5_forward.3} parent=23 // pred_check_branch
        %130 = sbr.rel (%p128) target = $region28
      $region27: #{lenet5_forward.3} parent=23 // pred_region
        %p131 = scmp.lt.s32.totalorder %s9, 1
        %s132 = scalar_select %p131, %s9, 1
        %s133 = smul.addr %s132, 100
        %s134 = smul.addr %s133, 8
        %s135 = scalar_lea.vmem %s0, %s134
      $region28: #{lenet5_forward.3} parent=23 // pred_fallthru
        _
    $region24: #{lenet5_forward.3} parent=5 // pred_fallthru
      _
    %p136 = scmp.le.s32.totalorder 1, %s9
    %p137 = scmp.lt.s32.totalorder %s9, 3
    %p138 = pnand %p136, %p137
    %p139 = pneg %p138
    // Predicated region
    $region29: #{lenet5_forward.3} parent=5 // pred_check
      _
    $region30: #{lenet5_forward.3} parent=5 // pred_check_branch
      %141 = sbr.rel (%p138) target = $region32
    $region31: #{lenet5_forward.3} parent=5 // pred_region
      %s142 = ssub.s32 %s9, 1
      %p143 = scmp.lt.s32.totalorder %s14, 1
      %s144 = scalar_select %p143, %s14, 1
      %s145 = smul.addr %s144, 100
      %s146 = smul.addr %s145, 8
      %s147 = scalar_lea.vmem %s0, %s146
      %p148 = pneg %p35
      %p149 = pneg %p32
      %p150 = pneg %p56
      %p151 = pneg %p53
      %p152 = pneg %p77
      %p153 = pneg %p74
      %p154 = pneg %p103
      %p155 = pneg %p100
      %p156 = scmp.lt.s32.totalorder %s14, 1
      %s157 = scalar_select %p156, %s14, 1
      %s158 = smul.addr %s157, 25
      %s159 = smul.addr %s158, 8
      %s160 = scalar_lea.vmem %s3, %s159
      %p161 = scmp.lt.s32.totalorder %s14, 1
      %s162 = scalar_select %p161, %s14, 1
      %s163 = smul.addr %s162, 100
      %s164 = smul.addr %s163, 8
      %s165 = scalar_lea.vmem %s0, %s164
      %p166 = scmp.lt.s32.totalorder %s14, 1
      %s167 = scalar_select %p166, %s14, 1
      %s168 = smul.addr %s167, 25
      %s169 = smul.addr %s168, 8
      %s170 = scalar_lea.vmem %s3, %s169
      %v171 = vld [vmem:[%s1] sm:$0xff]
      %v172 = vld [vmem:[%s1 + $0x8] sm:$0xff]
      %v173 = vld [vmem:[%s1 + $0x10] sm:$0xff]
      %v174 = vld [vmem:[%s1 + $0x18] sm:$0x1]
      %v175 = vld [vmem:[%s2] sm:$0x1]
      %v176 = vld [vmem:[%s165] sm:$0xff]
      %v177 = vld [vmem:[%s165 + $0x8] sm:$0xff]
      %v178 = vld [vmem:[%s165 + $0x10] sm:$0xff]
      %v179 = vld [vmem:[%s165 + $0x18] sm:$0xff]
      %v180 = vld [vmem:[%s165 + $0x20] sm:$0xff]
      %v181 = vld [vmem:[%s165 + $0x28] sm:$0xff]
      %v182 = vld [vmem:[%s165 + $0x30] sm:$0xff]
      %v183 = vld [vmem:[%s165 + $0x38] sm:$0xff]
      %v184 = vld [vmem:[%s165 + $0x40] sm:$0xff]
      %v185 = vld [vmem:[%s165 + $0x48] sm:$0xff]
      %v186 = vld [vmem:[%s165 + $0x50] sm:$0xff]
      %v187 = vld [vmem:[%s165 + $0x58] sm:$0xff]
      %v188 = vld [vmem:[%s165 + $0x60] sm:$0xff]
      %v189 = vld [vmem:[%s165 + $0x68] sm:$0xff]
      %v190 = vld [vmem:[%s165 + $0x70] sm:$0xff]
      %v191 = vld [vmem:[%s165 + $0x78] sm:$0xff]
      %v192 = vld [vmem:[%s165 + $0x80] sm:$0xff]
      %v193 = vld [vmem:[%s165 + $0x88] sm:$0xff]
      %v194 = vld [vmem:[%s165 + $0x90] sm:$0xff]
      %v195 = vld [vmem:[%s165 + $0x98] sm:$0xff]
      %v196 = vld [vmem:[%s165 + $0xa0] sm:$0xff]
      %v197 = vld [vmem:[%s165 + $0xa8] sm:$0xff]
      %v198 = vld [vmem:[%s165 + $0xb0] sm:$0xff]
      %v199 = vld [vmem:[%s165 + $0xb8] sm:$0xff]
      %v200 = vld [vmem:[%s165 + $0xc0] sm:$0xf]
      %v202 = vperm.slane %v175, 0
      %vm204 = vcmask 203776
      %v206 = vsel %vm204, %v176, 0
      %v209 = vsel %vm204, %v177, 0
      %v212 = vsel %vm204, %v178, 0
      %v215 = vsel %vm204, %v179, 0
      %v218 = vsel %vm204, %v180, 0
      %v221 = vsel %vm204, %v181, 0
      %v224 = vsel %vm204, %v182, 0
      %v227 = vsel %vm204, %v183, 0
      %v230 = vsel %vm204, %v184, 0
      %v233 = vsel %vm204, %v185, 0
      %v236 = vsel %vm204, %v186, 0
      %v239 = vsel %vm204, %v187, 0
      %v242 = vsel %vm204, %v188, 0
      %v245 = vsel %vm204, %v189, 0
      %v248 = vsel %vm204, %v190, 0
      %v251 = vsel %vm204, %v191, 0
      %v254 = vsel %vm204, %v192, 0
      %v257 = vsel %vm204, %v193, 0
      %v260 = vsel %vm204, %v194, 0
      %v263 = vsel %vm204, %v195, 0
      %v266 = vsel %vm204, %v196, 0
      %v269 = vsel %vm204, %v197, 0
      %v272 = vsel %vm204, %v198, 0
      %v275 = vsel %vm204, %v199, 0
      %v278 = vsel %vm204, %v200, 0
      %vm280 = vcmask 1040384
      %v282 = vsel %vm280, %v174, 0
      %284 = vmatpush.msra.mxu0 0.0
      %285 = vmatpush.msra.mxu0 0.0
      %286 = vmatpush.msra.mxu0 0.0
      %287 = vmatpush.msra.mxu0 0.0
      %288 = vmatpush.msra.mxu0 0.0
      %289 = vmatpush.msra.mxu0 0.0
      %290 = vmatpush.msra.mxu0 0.0
      %291 = vmatpush.msra.mxu0 0.0
      %292 = vmatpush.msra.mxu0 0.0
      %293 = vmatpush.msra.mxu0 0.0
      %294 = vmatpush.msra.mxu0 0.0
      %295 = vmatpush.msra.mxu0 0.0
      %296 = vmatpush.msra.mxu0 %v282
      %297 = vmatpush.msra.mxu0 %v173
      %298 = vmatpush.msra.mxu0 %v172
      %299 = vmatpush.msra.mxu0 %v171
      %300 = vmatmul.f32.gmra.mxu0 %v206
      %v301 = vpop.f32.mrf.mxu0
      %v302 = vadd.f32 %v202, %v301
      %303 = vmatmul.f32.gmra.mxu0 %v209
      %v304 = vpop.f32.mrf.mxu0
      %v305 = vadd.f32 %v202, %v304
      %306 = vmatmul.f32.gmra.mxu0 %v212
      %v307 = vpop.f32.mrf.mxu0
      %v308 = vadd.f32 %v202, %v307
      %309 = vmatmul.f32.gmra.mxu0 %v215
      %v310 = vpop.f32.mrf.mxu0
      %v311 = vadd.f32 %v202, %v310
      %312 = vmatmul.f32.gmra.mxu0 %v218
      %v313 = vpop.f32.mrf.mxu0
      %v314 = vadd.f32 %v202, %v313
      %315 = vmatmul.f32.gmra.mxu0 %v221
      %v316 = vpop.f32.mrf.mxu0
      %v317 = vadd.f32 %v202, %v316
      %318 = vmatmul.f32.gmra.mxu0 %v224
      %v319 = vpop.f32.mrf.mxu0
      %v320 = vadd.f32 %v202, %v319
      %321 = vmatmul.f32.gmra.mxu0 %v227
      %v322 = vpop.f32.mrf.mxu0
      %v323 = vadd.f32 %v202, %v322
      %324 = vmatmul.f32.gmra.mxu0 %v230
      %v325 = vpop.f32.mrf.mxu0
      %v326 = vadd.f32 %v202, %v325
      %327 = vmatmul.f32.gmra.mxu0 %v233
      %v328 = vpop.f32.mrf.mxu0
      %v329 = vadd.f32 %v202, %v328
      %330 = vmatmul.f32.gmra.mxu0 %v236
      %v331 = vpop.f32.mrf.mxu0
      %v332 = vadd.f32 %v202, %v331
      %333 = vmatmul.f32.gmra.mxu0 %v239
      %v334 = vpop.f32.mrf.mxu0
      %v335 = vadd.f32 %v202, %v334
      %336 = vmatmul.f32.gmra.mxu0 %v242
      %v337 = vpop.f32.mrf.mxu0
      %v338 = vadd.f32 %v202, %v337
      %339 = vmatmul.f32.gmra.mxu0 %v245
      %v340 = vpop.f32.mrf.mxu0
      %v341 = vadd.f32 %v202, %v340
      %342 = vmatmul.f32.gmra.mxu0 %v248
      %v343 = vpop.f32.mrf.mxu0
      %v344 = vadd.f32 %v202, %v343
      %345 = vmatmul.f32.gmra.mxu0 %v251
      %v346 = vpop.f32.mrf.mxu0
      %v347 = vadd.f32 %v202, %v346
      %348 = vmatmul.f32.gmra.mxu0 %v254
      %v349 = vpop.f32.mrf.mxu0
      %v350 = vadd.f32 %v202, %v349
      %351 = vmatmul.f32.gmra.mxu0 %v257
      %v352 = vpop.f32.mrf.mxu0
      %v353 = vadd.f32 %v202, %v352
      %354 = vmatmul.f32.gmra.mxu0 %v260
      %v355 = vpop.f32.mrf.mxu0
      %v356 = vadd.f32 %v202, %v355
      %357 = vmatmul.f32.gmra.mxu0 %v263
      %v358 = vpop.f32.mrf.mxu0
      %v359 = vadd.f32 %v202, %v358
      %360 = vmatmul.f32.gmra.mxu0 %v266
      %v361 = vpop.f32.mrf.mxu0
      %v362 = vadd.f32 %v202, %v361
      %363 = vmatmul.f32.gmra.mxu0 %v269
      %v364 = vpop.f32.mrf.mxu0
      %v365 = vadd.f32 %v202, %v364
      %366 = vmatmul.f32.gmra.mxu0 %v272
      %v367 = vpop.f32.mrf.mxu0
      %v368 = vadd.f32 %v202, %v367
      %369 = vmatmul.f32.gmra.mxu0 %v275
      %v370 = vpop.f32.mrf.mxu0
      %v371 = vadd.f32 %v202, %v370
      %372 = vmatmul.f32.gmra.mxu0 %v278
      %v373 = vpop.f32.mrf.mxu0
      %v374 = vadd.f32 %v202, %v373
      %375 = vdwg.mxu0
      %v376 = vmax.f32 %v302, 0.0
      %v377 = vmax.f32 %v305, 0.0
      %v378 = vmax.f32 %v308, 0.0
      %v379 = vmax.f32 %v311, 0.0
      %v380 = vmax.f32 %v314, 0.0
      %v381 = vmax.f32 %v317, 0.0
      %v382 = vmax.f32 %v320, 0.0
      %v383 = vmax.f32 %v323, 0.0
      %v384 = vmax.f32 %v326, 0.0
      %v385 = vmax.f32 %v329, 0.0
      %v386 = vmax.f32 %v332, 0.0
      %v387 = vmax.f32 %v335, 0.0
      %v388 = vmax.f32 %v338, 0.0
      %v389 = vmax.f32 %v341, 0.0
      %v390 = vmax.f32 %v344, 0.0
      %v391 = vmax.f32 %v347, 0.0
      %v392 = vmax.f32 %v350, 0.0
      %v393 = vmax.f32 %v353, 0.0
      %v394 = vmax.f32 %v356, 0.0
      %v395 = vmax.f32 %v359, 0.0
      %v396 = vmax.f32 %v362, 0.0
      %v397 = vmax.f32 %v365, 0.0
      %v398 = vmax.f32 %v368, 0.0
      %v399 = vmax.f32 %v371, 0.0
      %v400 = vmax.f32 %v374, 0.0
      %s401 = scalar_lea.vmem %s165, 200
      %v402 = vld [vmem:[%s401] sm:$0xff]
      %v403 = vld [vmem:[%s401 + $0x8] sm:$0xff]
      %v404 = vld [vmem:[%s401 + $0x10] sm:$0xff]
      %v405 = vld [vmem:[%s401 + $0x18] sm:$0xff]
      %v406 = vld [vmem:[%s401 + $0x20] sm:$0xff]
      %v407 = vld [vmem:[%s401 + $0x28] sm:$0xff]
      %v408 = vld [vmem:[%s401 + $0x30] sm:$0xff]
      %v409 = vld [vmem:[%s401 + $0x38] sm:$0xff]
      %v410 = vld [vmem:[%s401 + $0x40] sm:$0xff]
      %v411 = vld [vmem:[%s401 + $0x48] sm:$0xff]
      %v412 = vld [vmem:[%s401 + $0x50] sm:$0xff]
      %v413 = vld [vmem:[%s401 + $0x58] sm:$0xff]
      %v414 = vld [vmem:[%s401 + $0x60] sm:$0xff]
      %v415 = vld [vmem:[%s401 + $0x68] sm:$0xff]
      %v416 = vld [vmem:[%s401 + $0x70] sm:$0xff]
      %v417 = vld [vmem:[%s401 + $0x78] sm:$0xff]
      %v418 = vld [vmem:[%s401 + $0x80] sm:$0xff]
      %v419 = vld [vmem:[%s401 + $0x88] sm:$0xff]
      %v420 = vld [vmem:[%s401 + $0x90] sm:$0xff]
      %v421 = vld [vmem:[%s401 + $0x98] sm:$0xff]
      %v422 = vld [vmem:[%s401 + $0xa0] sm:$0xff]
      %v423 = vld [vmem:[%s401 + $0xa8] sm:$0xff]
      %v424 = vld [vmem:[%s401 + $0xb0] sm:$0xff]
      %v425 = vld [vmem:[%s401 + $0xb8] sm:$0xff]
      %v426 = vld [vmem:[%s401 + $0xc0] sm:$0xf]
      %v428 = vsel %vm204, %v402, 0
      %v431 = vsel %vm204, %v403, 0
      %v434 = vsel %vm204, %v404, 0
      %v437 = vsel %vm204, %v405, 0
      %v440 = vsel %vm204, %v406, 0
      %v443 = vsel %vm204, %v407, 0
      %v446 = vsel %vm204, %v408, 0
      %v449 = vsel %vm204, %v409, 0
      %v452 = vsel %vm204, %v410, 0
      %v455 = vsel %vm204, %v411, 0
      %v458 = vsel %vm204, %v412, 0
      %v461 = vsel %vm204, %v413, 0
      %v464 = vsel %vm204, %v414, 0
      %v467 = vsel %vm204, %v415, 0
      %v470 = vsel %vm204, %v416, 0
      %v473 = vsel %vm204, %v417, 0
      %v476 = vsel %vm204, %v418, 0
      %v479 = vsel %vm204, %v419, 0
      %v482 = vsel %vm204, %v420, 0
      %v485 = vsel %vm204, %v421, 0
      %v488 = vsel %vm204, %v422, 0
      %v491 = vsel %vm204, %v423, 0
      %v494 = vsel %vm204, %v424, 0
      %v497 = vsel %vm204, %v425, 0
      %v500 = vsel %vm204, %v426, 0
      %502 = vmatpush.msra.mxu0 0.0
      %503 = vmatpush.msra.mxu0 0.0
      %504 = vmatpush.msra.mxu0 0.0
      %505 = vmatpush.msra.mxu0 0.0
      %506 = vmatpush.msra.mxu0 0.0
      %507 = vmatpush.msra.mxu0 0.0
      %508 = vmatpush.msra.mxu0 0.0
      %509 = vmatpush.msra.mxu0 0.0
      %510 = vmatpush.msra.mxu0 0.0
      %511 = vmatpush.msra.mxu0 0.0
      %512 = vmatpush.msra.mxu0 0.0
      %513 = vmatpush.msra.mxu0 0.0
      %514 = vmatpush.msra.mxu0 %v282
      %515 = vmatpush.msra.mxu0 %v173
      %516 = vmatpush.msra.mxu0 %v172
      %517 = vmatpush.msra.mxu0 %v171
      %518 = vmatmul.f32.gmra.mxu0 %v428
      %v519 = vpop.f32.mrf.mxu0
      %v520 = vadd.f32 %v202, %v519
      %521 = vmatmul.f32.gmra.mxu0 %v431
      %v522 = vpop.f32.mrf.mxu0
      %v523 = vadd.f32 %v202, %v522
      %524 = vmatmul.f32.gmra.mxu0 %v434
      %v525 = vpop.f32.mrf.mxu0
      %v526 = vadd.f32 %v202, %v525
      %527 = vmatmul.f32.gmra.mxu0 %v437
      %v528 = vpop.f32.mrf.mxu0
      %v529 = vadd.f32 %v202, %v528
      %530 = vmatmul.f32.gmra.mxu0 %v440
      %v531 = vpop.f32.mrf.mxu0
      %v532 = vadd.f32 %v202, %v531
      %533 = vmatmul.f32.gmra.mxu0 %v443
      %v534 = vpop.f32.mrf.mxu0
      %v535 = vadd.f32 %v202, %v534
      %536 = vmatmul.f32.gmra.mxu0 %v446
      %v537 = vpop.f32.mrf.mxu0
      %v538 = vadd.f32 %v202, %v537
      %539 = vmatmul.f32.gmra.mxu0 %v449
      %v540 = vpop.f32.mrf.mxu0
      %v541 = vadd.f32 %v202, %v540
      %542 = vmatmul.f32.gmra.mxu0 %v452
      %v543 = vpop.f32.mrf.mxu0
      %v544 = vadd.f32 %v202, %v543
      %545 = vmatmul.f32.gmra.mxu0 %v455
      %v546 = vpop.f32.mrf.mxu0
      %v547 = vadd.f32 %v202, %v546
      %548 = vmatmul.f32.gmra.mxu0 %v458
      %v549 = vpop.f32.mrf.mxu0
      %v550 = vadd.f32 %v202, %v549
      %551 = vmatmul.f32.gmra.mxu0 %v461
      %v552 = vpop.f32.mrf.mxu0
      %v553 = vadd.f32 %v202, %v552
      %554 = vmatmul.f32.gmra.mxu0 %v464
      %v555 = vpop.f32.mrf.mxu0
      %v556 = vadd.f32 %v202, %v555
      %557 = vmatmul.f32.gmra.mxu0 %v467
      %v558 = vpop.f32.mrf.mxu0
      %v559 = vadd.f32 %v202, %v558
      %560 = vmatmul.f32.gmra.mxu0 %v470
      %v561 = vpop.f32.mrf.mxu0
      %v562 = vadd.f32 %v202, %v561
      %563 = vmatmul.f32.gmra.mxu0 %v473
      %v564 = vpop.f32.mrf.mxu0
      %v565 = vadd.f32 %v202, %v564
      %566 = vmatmul.f32.gmra.mxu0 %v476
      %v567 = vpop.f32.mrf.mxu0
      %v568 = vadd.f32 %v202, %v567
      %569 = vmatmul.f32.gmra.mxu0 %v479
      %v570 = vpop.f32.mrf.mxu0
      %v571 = vadd.f32 %v202, %v570
      %572 = vmatmul.f32.gmra.mxu0 %v482
      %v573 = vpop.f32.mrf.mxu0
      %v574 = vadd.f32 %v202, %v573
      %575 = vmatmul.f32.gmra.mxu0 %v485
      %v576 = vpop.f32.mrf.mxu0
      %v577 = vadd.f32 %v202, %v576
      %578 = vmatmul.f32.gmra.mxu0 %v488
      %v579 = vpop.f32.mrf.mxu0
      %v580 = vadd.f32 %v202, %v579
      %581 = vmatmul.f32.gmra.mxu0 %v491
      %v582 = vpop.f32.mrf.mxu0
      %v583 = vadd.f32 %v202, %v582
      %584 = vmatmul.f32.gmra.mxu0 %v494
      %v585 = vpop.f32.mrf.mxu0
      %v586 = vadd.f32 %v202, %v585
      %587 = vmatmul.f32.gmra.mxu0 %v497
      %v588 = vpop.f32.mrf.mxu0
      %v589 = vadd.f32 %v202, %v588
      %590 = vmatmul.f32.gmra.mxu0 %v500
      %v591 = vpop.f32.mrf.mxu0
      %v592 = vadd.f32 %v202, %v591
      %593 = vdwg.mxu0
      %v594 = vmax.f32 %v520, 0.0
      %v595 = vmax.f32 %v523, 0.0
      %v596 = vmax.f32 %v526, 0.0
      %v597 = vmax.f32 %v529, 0.0
      %v598 = vmax.f32 %v532, 0.0
      %v599 = vmax.f32 %v535, 0.0
      %v600 = vmax.f32 %v538, 0.0
      %v601 = vmax.f32 %v541, 0.0
      %v602 = vmax.f32 %v544, 0.0
      %v603 = vmax.f32 %v547, 0.0
      %v604 = vmax.f32 %v550, 0.0
      %v605 = vmax.f32 %v553, 0.0
      %v606 = vmax.f32 %v556, 0.0
      %v607 = vmax.f32 %v559, 0.0
      %v608 = vmax.f32 %v562, 0.0
      %v609 = vmax.f32 %v565, 0.0
      %v610 = vmax.f32 %v568, 0.0
      %v611 = vmax.f32 %v571, 0.0
      %v612 = vmax.f32 %v574, 0.0
      %v613 = vmax.f32 %v577, 0.0
      %v614 = vmax.f32 %v580, 0.0
      %v615 = vmax.f32 %v583, 0.0
      %v616 = vmax.f32 %v586, 0.0
      %v617 = vmax.f32 %v589, 0.0
      %v618 = vmax.f32 %v592, 0.0
      %v619 = vmax.f32 %v376, %v594
      %v620 = vmax.f32 %v377, %v595
      %v621 = vmax.f32 %v378, %v596
      %v622 = vmax.f32 %v379, %v597
      %v623 = vmax.f32 %v380, %v598
      %v624 = vmax.f32 %v381, %v599
      %v625 = vmax.f32 %v382, %v600
      %v626 = vmax.f32 %v383, %v601
      %v627 = vmax.f32 %v384, %v602
      %v628 = vmax.f32 %v385, %v603
      %v629 = vmax.f32 %v386, %v604
      %v630 = vmax.f32 %v387, %v605
      %v631 = vmax.f32 %v388, %v606
      %v632 = vmax.f32 %v389, %v607
      %v633 = vmax.f32 %v390, %v608
      %v634 = vmax.f32 %v391, %v609
      %v635 = vmax.f32 %v392, %v610
      %v636 = vmax.f32 %v393, %v611
      %v637 = vmax.f32 %v394, %v612
      %v638 = vmax.f32 %v395, %v613
      %v639 = vmax.f32 %v396, %v614
      %v640 = vmax.f32 %v397, %v615
      %v641 = vmax.f32 %v398, %v616
      %v642 = vmax.f32 %v399, %v617
      %v643 = vmax.f32 %v400, %v618
      %s644 = scalar_lea.vmem %s165, 400
      %v645 = vld [vmem:[%s644] sm:$0xff]
      %v646 = vld [vmem:[%s644 + $0x8] sm:$0xff]
      %v647 = vld [vmem:[%s644 + $0x10] sm:$0xff]
      %v648 = vld [vmem:[%s644 + $0x18] sm:$0xff]
      %v649 = vld [vmem:[%s644 + $0x20] sm:$0xff]
      %v650 = vld [vmem:[%s644 + $0x28] sm:$0xff]
      %v651 = vld [vmem:[%s644 + $0x30] sm:$0xff]
      %v652 = vld [vmem:[%s644 + $0x38] sm:$0xff]
      %v653 = vld [vmem:[%s644 + $0x40] sm:$0xff]
      %v654 = vld [vmem:[%s644 + $0x48] sm:$0xff]
      %v655 = vld [vmem:[%s644 + $0x50] sm:$0xff]
      %v656 = vld [vmem:[%s644 + $0x58] sm:$0xff]
      %v657 = vld [vmem:[%s644 + $0x60] sm:$0xff]
      %v658 = vld [vmem:[%s644 + $0x68] sm:$0xff]
      %v659 = vld [vmem:[%s644 + $0x70] sm:$0xff]
      %v660 = vld [vmem:[%s644 + $0x78] sm:$0xff]
      %v661 = vld [vmem:[%s644 + $0x80] sm:$0xff]
      %v662 = vld [vmem:[%s644 + $0x88] sm:$0xff]
      %v663 = vld [vmem:[%s644 + $0x90] sm:$0xff]
      %v664 = vld [vmem:[%s644 + $0x98] sm:$0xff]
      %v665 = vld [vmem:[%s644 + $0xa0] sm:$0xff]
      %v666 = vld [vmem:[%s644 + $0xa8] sm:$0xff]
      %v667 = vld [vmem:[%s644 + $0xb0] sm:$0xff]
      %v668 = vld [vmem:[%s644 + $0xb8] sm:$0xff]
      %v669 = vld [vmem:[%s644 + $0xc0] sm:$0xf]
      %v671 = vsel %vm204, %v645, 0
      %v674 = vsel %vm204, %v646, 0
      %v677 = vsel %vm204, %v647, 0
      %v680 = vsel %vm204, %v648, 0
      %v683 = vsel %vm204, %v649, 0
      %v686 = vsel %vm204, %v650, 0
      %v689 = vsel %vm204, %v651, 0
      %v692 = vsel %vm204, %v652, 0
      %v695 = vsel %vm204, %v653, 0
      %v698 = vsel %vm204, %v654, 0
      %v701 = vsel %vm204, %v655, 0
      %v704 = vsel %vm204, %v656, 0
      %v707 = vsel %vm204, %v657, 0
      %v710 = vsel %vm204, %v658, 0
      %v713 = vsel %vm204, %v659, 0
      %v716 = vsel %vm204, %v660, 0
      %v719 = vsel %vm204, %v661, 0
      %v722 = vsel %vm204, %v662, 0
      %v725 = vsel %vm204, %v663, 0
      %v728 = vsel %vm204, %v664, 0
      %v731 = vsel %vm204, %v665, 0
      %v734 = vsel %vm204, %v666, 0
      %v737 = vsel %vm204, %v667, 0
      %v740 = vsel %vm204, %v668, 0
      %v743 = vsel %vm204, %v669, 0
      %745 = vmatpush.msra.mxu0 0.0
      %746 = vmatpush.msra.mxu0 0.0
      %747 = vmatpush.msra.mxu0 0.0
      %748 = vmatpush.msra.mxu0 0.0
      %749 = vmatpush.msra.mxu0 0.0
      %750 = vmatpush.msra.mxu0 0.0
      %751 = vmatpush.msra.mxu0 0.0
      %752 = vmatpush.msra.mxu0 0.0
      %753 = vmatpush.msra.mxu0 0.0
      %754 = vmatpush.msra.mxu0 0.0
      %755 = vmatpush.msra.mxu0 0.0
      %756 = vmatpush.msra.mxu0 0.0
      %757 = vmatpush.msra.mxu0 %v282
      %758 = vmatpush.msra.mxu0 %v173
      %759 = vmatpush.msra.mxu0 %v172
      %760 = vmatpush.msra.mxu0 %v171
      %761 = vmatmul.f32.gmra.mxu0 %v671
      %v762 = vpop.f32.mrf.mxu0
      %v763 = vadd.f32 %v202, %v762
      %764 = vmatmul.f32.gmra.mxu0 %v674
      %v765 = vpop.f32.mrf.mxu0
      %v766 = vadd.f32 %v202, %v765
      %767 = vmatmul.f32.gmra.mxu0 %v677
      %v768 = vpop.f32.mrf.mxu0
      %v769 = vadd.f32 %v202, %v768
      %770 = vmatmul.f32.gmra.mxu0 %v680
      %v771 = vpop.f32.mrf.mxu0
      %v772 = vadd.f32 %v202, %v771
      %773 = vmatmul.f32.gmra.mxu0 %v683
      %v774 = vpop.f32.mrf.mxu0
      %v775 = vadd.f32 %v202, %v774
      %776 = vmatmul.f32.gmra.mxu0 %v686
      %v777 = vpop.f32.mrf.mxu0
      %v778 = vadd.f32 %v202, %v777
      %779 = vmatmul.f32.gmra.mxu0 %v689
      %v780 = vpop.f32.mrf.mxu0
      %v781 = vadd.f32 %v202, %v780
      %782 = vmatmul.f32.gmra.mxu0 %v692
      %v783 = vpop.f32.mrf.mxu0
      %v784 = vadd.f32 %v202, %v783
      %785 = vmatmul.f32.gmra.mxu0 %v695
      %v786 = vpop.f32.mrf.mxu0
      %v787 = vadd.f32 %v202, %v786
      %788 = vmatmul.f32.gmra.mxu0 %v698
      %v789 = vpop.f32.mrf.mxu0
      %v790 = vadd.f32 %v202, %v789
      %791 = vmatmul.f32.gmra.mxu0 %v701
      %v792 = vpop.f32.mrf.mxu0
      %v793 = vadd.f32 %v202, %v792
      %794 = vmatmul.f32.gmra.mxu0 %v704
      %v795 = vpop.f32.mrf.mxu0
      %v796 = vadd.f32 %v202, %v795
      %797 = vmatmul.f32.gmra.mxu0 %v707
      %v798 = vpop.f32.mrf.mxu0
      %v799 = vadd.f32 %v202, %v798
      %800 = vmatmul.f32.gmra.mxu0 %v710
      %v801 = vpop.f32.mrf.mxu0
      %v802 = vadd.f32 %v202, %v801
      %803 = vmatmul.f32.gmra.mxu0 %v713
      %v804 = vpop.f32.mrf.mxu0
      %v805 = vadd.f32 %v202, %v804
      %806 = vmatmul.f32.gmra.mxu0 %v716
      %v807 = vpop.f32.mrf.mxu0
      %v808 = vadd.f32 %v202, %v807
      %809 = vmatmul.f32.gmra.mxu0 %v719
      %v810 = vpop.f32.mrf.mxu0
      %v811 = vadd.f32 %v202, %v810
      %812 = vmatmul.f32.gmra.mxu0 %v722
      %v813 = vpop.f32.mrf.mxu0
      %v814 = vadd.f32 %v202, %v813
      %815 = vmatmul.f32.gmra.mxu0 %v725
      %v816 = vpop.f32.mrf.mxu0
      %v817 = vadd.f32 %v202, %v816
      %818 = vmatmul.f32.gmra.mxu0 %v728
      %v819 = vpop.f32.mrf.mxu0
      %v820 = vadd.f32 %v202, %v819
      %821 = vmatmul.f32.gmra.mxu0 %v731
      %v822 = vpop.f32.mrf.mxu0
      %v823 = vadd.f32 %v202, %v822
      %824 = vmatmul.f32.gmra.mxu0 %v734
      %v825 = vpop.f32.mrf.mxu0
      %v826 = vadd.f32 %v202, %v825
      %827 = vmatmul.f32.gmra.mxu0 %v737
      %v828 = vpop.f32.mrf.mxu0
      %v829 = vadd.f32 %v202, %v828
      %830 = vmatmul.f32.gmra.mxu0 %v740
      %v831 = vpop.f32.mrf.mxu0
      %v832 = vadd.f32 %v202, %v831
      %833 = vmatmul.f32.gmra.mxu0 %v743
      %v834 = vpop.f32.mrf.mxu0
      %v835 = vadd.f32 %v202, %v834
      %836 = vdwg.mxu0
      %v837 = vmax.f32 %v763, 0.0
      %v838 = vmax.f32 %v766, 0.0
      %v839 = vmax.f32 %v769, 0.0
      %v840 = vmax.f32 %v772, 0.0
      %v841 = vmax.f32 %v775, 0.0
      %v842 = vmax.f32 %v778, 0.0
      %v843 = vmax.f32 %v781, 0.0
      %v844 = vmax.f32 %v784, 0.0
      %v845 = vmax.f32 %v787, 0.0
      %v846 = vmax.f32 %v790, 0.0
      %v847 = vmax.f32 %v793, 0.0
      %v848 = vmax.f32 %v796, 0.0
      %v849 = vmax.f32 %v799, 0.0
      %v850 = vmax.f32 %v802, 0.0
      %v851 = vmax.f32 %v805, 0.0
      %v852 = vmax.f32 %v808, 0.0
      %v853 = vmax.f32 %v811, 0.0
      %v854 = vmax.f32 %v814, 0.0
      %v855 = vmax.f32 %v817, 0.0
      %v856 = vmax.f32 %v820, 0.0
      %v857 = vmax.f32 %v823, 0.0
      %v858 = vmax.f32 %v826, 0.0
      %v859 = vmax.f32 %v829, 0.0
      %v860 = vmax.f32 %v832, 0.0
      %v861 = vmax.f32 %v835, 0.0
      %v862 = vmax.f32 %v619, %v837
      %v863 = vmax.f32 %v620, %v838
      %v864 = vmax.f32 %v621, %v839
      %v865 = vmax.f32 %v622, %v840
      %v866 = vmax.f32 %v623, %v841
      %v867 = vmax.f32 %v624, %v842
      %v868 = vmax.f32 %v625, %v843
      %v869 = vmax.f32 %v626, %v844
      %v870 = vmax.f32 %v627, %v845
      %v871 = vmax.f32 %v628, %v846
      %v872 = vmax.f32 %v629, %v847
      %v873 = vmax.f32 %v630, %v848
      %v874 = vmax.f32 %v631, %v849
      %v875 = vmax.f32 %v632, %v850
      %v876 = vmax.f32 %v633, %v851
      %v877 = vmax.f32 %v634, %v852
      %v878 = vmax.f32 %v635, %v853
      %v879 = vmax.f32 %v636, %v854
      %v880 = vmax.f32 %v637, %v855
      %v881 = vmax.f32 %v638, %v856
      %v882 = vmax.f32 %v639, %v857
      %v883 = vmax.f32 %v640, %v858
      %v884 = vmax.f32 %v641, %v859
      %v885 = vmax.f32 %v642, %v860
      %v886 = vmax.f32 %v643, %v861
      %s887 = scalar_lea.vmem %s165, 600
      %v888 = vld [vmem:[%s887] sm:$0xff]
      %v889 = vld [vmem:[%s887 + $0x8] sm:$0xff]
      %v890 = vld [vmem:[%s887 + $0x10] sm:$0xff]
      %v891 = vld [vmem:[%s887 + $0x18] sm:$0xff]
      %v892 = vld [vmem:[%s887 + $0x20] sm:$0xff]
      %v893 = vld [vmem:[%s887 + $0x28] sm:$0xff]
      %v894 = vld [vmem:[%s887 + $0x30] sm:$0xff]
      %v895 = vld [vmem:[%s887 + $0x38] sm:$0xff]
      %v896 = vld [vmem:[%s887 + $0x40] sm:$0xff]
      %v897 = vld [vmem:[%s887 + $0x48] sm:$0xff]
      %v898 = vld [vmem:[%s887 + $0x50] sm:$0xff]
      %v899 = vld [vmem:[%s887 + $0x58] sm:$0xff]
      %v900 = vld [vmem:[%s887 + $0x60] sm:$0xff]
      %v901 = vld [vmem:[%s887 + $0x68] sm:$0xff]
      %v902 = vld [vmem:[%s887 + $0x70] sm:$0xff]
      %v903 = vld [vmem:[%s887 + $0x78] sm:$0xff]
      %v904 = vld [vmem:[%s887 + $0x80] sm:$0xff]
      %v905 = vld [vmem:[%s887 + $0x88] sm:$0xff]
      %v906 = vld [vmem:[%s887 + $0x90] sm:$0xff]
      %v907 = vld [vmem:[%s887 + $0x98] sm:$0xff]
      %v908 = vld [vmem:[%s887 + $0xa0] sm:$0xff]
      %v909 = vld [vmem:[%s887 + $0xa8] sm:$0xff]
      %v910 = vld [vmem:[%s887 + $0xb0] sm:$0xff]
      %v911 = vld [vmem:[%s887 + $0xb8] sm:$0xff]
      %v912 = vld [vmem:[%s887 + $0xc0] sm:$0xf]
      %v914 = vsel %vm204, %v888, 0
      %v917 = vsel %vm204, %v889, 0
      %v920 = vsel %vm204, %v890, 0
      %v923 = vsel %vm204, %v891, 0
      %v926 = vsel %vm204, %v892, 0
      %v929 = vsel %vm204, %v893, 0
      %v932 = vsel %vm204, %v894, 0
      %v935 = vsel %vm204, %v895, 0
      %v938 = vsel %vm204, %v896, 0
      %v941 = vsel %vm204, %v897, 0
      %v944 = vsel %vm204, %v898, 0
      %v947 = vsel %vm204, %v899, 0
      %v950 = vsel %vm204, %v900, 0
      %v953 = vsel %vm204, %v901, 0
      %v956 = vsel %vm204, %v902, 0
      %v959 = vsel %vm204, %v903, 0
      %v962 = vsel %vm204, %v904, 0
      %v965 = vsel %vm204, %v905, 0
      %v968 = vsel %vm204, %v906, 0
      %v971 = vsel %vm204, %v907, 0
      %v974 = vsel %vm204, %v908, 0
      %v977 = vsel %vm204, %v909, 0
      %v980 = vsel %vm204, %v910, 0
      %v983 = vsel %vm204, %v911, 0
      %v986 = vsel %vm204, %v912, 0
      %988 = vmatpush.msra.mxu0 0.0
      %989 = vmatpush.msra.mxu0 0.0
      %990 = vmatpush.msra.mxu0 0.0
      %991 = vmatpush.msra.mxu0 0.0
      %992 = vmatpush.msra.mxu0 0.0
      %993 = vmatpush.msra.mxu0 0.0
      %994 = vmatpush.msra.mxu0 0.0
      %995 = vmatpush.msra.mxu0 0.0
      %996 = vmatpush.msra.mxu0 0.0
      %997 = vmatpush.msra.mxu0 0.0
      %998 = vmatpush.msra.mxu0 0.0
      %999 = vmatpush.msra.mxu0 0.0
      %1000 = vmatpush.msra.mxu0 %v282
      %1001 = vmatpush.msra.mxu0 %v173
      %1002 = vmatpush.msra.mxu0 %v172
      %1003 = vmatpush.msra.mxu0 %v171
      %1004 = vmatmul.f32.gmra.mxu0 %v914
      %v1005 = vpop.f32.mrf.mxu0
      %v1006 = vadd.f32 %v202, %v1005
      %1007 = vmatmul.f32.gmra.mxu0 %v917
      %v1008 = vpop.f32.mrf.mxu0
      %v1009 = vadd.f32 %v202, %v1008
      %1010 = vmatmul.f32.gmra.mxu0 %v920
      %v1011 = vpop.f32.mrf.mxu0
      %v1012 = vadd.f32 %v202, %v1011
      %1013 = vmatmul.f32.gmra.mxu0 %v923
      %v1014 = vpop.f32.mrf.mxu0
      %v1015 = vadd.f32 %v202, %v1014
      %1016 = vmatmul.f32.gmra.mxu0 %v926
      %v1017 = vpop.f32.mrf.mxu0
      %v1018 = vadd.f32 %v202, %v1017
      %1019 = vmatmul.f32.gmra.mxu0 %v929
      %v1020 = vpop.f32.mrf.mxu0
      %v1021 = vadd.f32 %v202, %v1020
      %1022 = vmatmul.f32.gmra.mxu0 %v932
      %v1023 = vpop.f32.mrf.mxu0
      %v1024 = vadd.f32 %v202, %v1023
      %1025 = vmatmul.f32.gmra.mxu0 %v935
      %v1026 = vpop.f32.mrf.mxu0
      %v1027 = vadd.f32 %v202, %v1026
      %1028 = vmatmul.f32.gmra.mxu0 %v938
      %v1029 = vpop.f32.mrf.mxu0
      %v1030 = vadd.f32 %v202, %v1029
      %1031 = vmatmul.f32.gmra.mxu0 %v941
      %v1032 = vpop.f32.mrf.mxu0
      %v1033 = vadd.f32 %v202, %v1032
      %1034 = vmatmul.f32.gmra.mxu0 %v944
      %v1035 = vpop.f32.mrf.mxu0
      %v1036 = vadd.f32 %v202, %v1035
      %1037 = vmatmul.f32.gmra.mxu0 %v947
      %v1038 = vpop.f32.mrf.mxu0
      %v1039 = vadd.f32 %v202, %v1038
      %1040 = vmatmul.f32.gmra.mxu0 %v950
      %v1041 = vpop.f32.mrf.mxu0
      %v1042 = vadd.f32 %v202, %v1041
      %1043 = vmatmul.f32.gmra.mxu0 %v953
      %v1044 = vpop.f32.mrf.mxu0
      %v1045 = vadd.f32 %v202, %v1044
      %1046 = vmatmul.f32.gmra.mxu0 %v956
      %v1047 = vpop.f32.mrf.mxu0
      %v1048 = vadd.f32 %v202, %v1047
      %1049 = vmatmul.f32.gmra.mxu0 %v959
      %v1050 = vpop.f32.mrf.mxu0
      %v1051 = vadd.f32 %v202, %v1050
      %1052 = vmatmul.f32.gmra.mxu0 %v962
      %v1053 = vpop.f32.mrf.mxu0
      %v1054 = vadd.f32 %v202, %v1053
      %1055 = vmatmul.f32.gmra.mxu0 %v965
      %v1056 = vpop.f32.mrf.mxu0
      %v1057 = vadd.f32 %v202, %v1056
      %1058 = vmatmul.f32.gmra.mxu0 %v968
      %v1059 = vpop.f32.mrf.mxu0
      %v1060 = vadd.f32 %v202, %v1059
      %1061 = vmatmul.f32.gmra.mxu0 %v971
      %v1062 = vpop.f32.mrf.mxu0
      %v1063 = vadd.f32 %v202, %v1062
      %1064 = vmatmul.f32.gmra.mxu0 %v974
      %v1065 = vpop.f32.mrf.mxu0
      %v1066 = vadd.f32 %v202, %v1065
      %1067 = vmatmul.f32.gmra.mxu0 %v977
      %v1068 = vpop.f32.mrf.mxu0
      %v1069 = vadd.f32 %v202, %v1068
      %1070 = vmatmul.f32.gmra.mxu0 %v980
      %v1071 = vpop.f32.mrf.mxu0
      %v1072 = vadd.f32 %v202, %v1071
      %1073 = vmatmul.f32.gmra.mxu0 %v983
      %v1074 = vpop.f32.mrf.mxu0
      %v1075 = vadd.f32 %v202, %v1074
      %1076 = vmatmul.f32.gmra.mxu0 %v986
      %v1077 = vpop.f32.mrf.mxu0
      %v1078 = vadd.f32 %v202, %v1077
      %1079 = vdwg.mxu0
      %v1080 = vmax.f32 %v1006, 0.0
      %v1081 = vmax.f32 %v1009, 0.0
      %v1082 = vmax.f32 %v1012, 0.0
      %v1083 = vmax.f32 %v1015, 0.0
      %v1084 = vmax.f32 %v1018, 0.0
      %v1085 = vmax.f32 %v1021, 0.0
      %v1086 = vmax.f32 %v1024, 0.0
      %v1087 = vmax.f32 %v1027, 0.0
      %v1088 = vmax.f32 %v1030, 0.0
      %v1089 = vmax.f32 %v1033, 0.0
      %v1090 = vmax.f32 %v1036, 0.0
      %v1091 = vmax.f32 %v1039, 0.0
      %v1092 = vmax.f32 %v1042, 0.0
      %v1093 = vmax.f32 %v1045, 0.0
      %v1094 = vmax.f32 %v1048, 0.0
      %v1095 = vmax.f32 %v1051, 0.0
      %v1096 = vmax.f32 %v1054, 0.0
      %v1097 = vmax.f32 %v1057, 0.0
      %v1098 = vmax.f32 %v1060, 0.0
      %v1099 = vmax.f32 %v1063, 0.0
      %v1100 = vmax.f32 %v1066, 0.0
      %v1101 = vmax.f32 %v1069, 0.0
      %v1102 = vmax.f32 %v1072, 0.0
      %v1103 = vmax.f32 %v1075, 0.0
      %v1104 = vmax.f32 %v1078, 0.0
      %v1105 = vmax.f32 %v862, %v1080
      %v1106 = vmax.f32 %v863, %v1081
      %v1107 = vmax.f32 %v864, %v1082
      %v1108 = vmax.f32 %v865, %v1083
      %v1109 = vmax.f32 %v866, %v1084
      %v1110 = vmax.f32 %v867, %v1085
      %v1111 = vmax.f32 %v868, %v1086
      %v1112 = vmax.f32 %v869, %v1087
      %v1113 = vmax.f32 %v870, %v1088
      %v1114 = vmax.f32 %v871, %v1089
      %v1115 = vmax.f32 %v872, %v1090
      %v1116 = vmax.f32 %v873, %v1091
      %v1117 = vmax.f32 %v874, %v1092
      %v1118 = vmax.f32 %v875, %v1093
      %v1119 = vmax.f32 %v876, %v1094
      %v1120 = vmax.f32 %v877, %v1095
      %v1121 = vmax.f32 %v878, %v1096
      %v1122 = vmax.f32 %v879, %v1097
      %v1123 = vmax.f32 %v880, %v1098
      %v1124 = vmax.f32 %v881, %v1099
      %v1125 = vmax.f32 %v882, %v1100
      %v1126 = vmax.f32 %v883, %v1101
      %v1127 = vmax.f32 %v884, %v1102
      %v1128 = vmax.f32 %v885, %v1103
      %v1129 = vmax.f32 %v886, %v1104
      %1130 = vst [vmem:[%s170] sm:$0xff] %v1105
      %1131 = vst [vmem:[%s170 + $0x8] sm:$0xff] %v1106
      %1132 = vst [vmem:[%s170 + $0x10] sm:$0xff] %v1107
      %1133 = vst [vmem:[%s170 + $0x18] sm:$0xff] %v1108
      %1134 = vst [vmem:[%s170 + $0x20] sm:$0xff] %v1109
      %1135 = vst [vmem:[%s170 + $0x28] sm:$0xff] %v1110
      %1136 = vst [vmem:[%s170 + $0x30] sm:$0xff] %v1111
      %1137 = vst [vmem:[%s170 + $0x38] sm:$0xff] %v1112
      %1138 = vst [vmem:[%s170 + $0x40] sm:$0xff] %v1113
      %1139 = vst [vmem:[%s170 + $0x48] sm:$0xff] %v1114
      %1140 = vst [vmem:[%s170 + $0x50] sm:$0xff] %v1115
      %1141 = vst [vmem:[%s170 + $0x58] sm:$0xff] %v1116
      %1142 = vst [vmem:[%s170 + $0x60] sm:$0xff] %v1117
      %1143 = vst [vmem:[%s170 + $0x68] sm:$0xff] %v1118
      %1144 = vst [vmem:[%s170 + $0x70] sm:$0xff] %v1119
      %1145 = vst [vmem:[%s170 + $0x78] sm:$0xff] %v1120
      %1146 = vst [vmem:[%s170 + $0x80] sm:$0xff] %v1121
      %1147 = vst [vmem:[%s170 + $0x88] sm:$0xff] %v1122
      %1148 = vst [vmem:[%s170 + $0x90] sm:$0xff] %v1123
      %1149 = vst [vmem:[%s170 + $0x98] sm:$0xff] %v1124
      %1150 = vst [vmem:[%s170 + $0xa0] sm:$0xff] %v1125
      %1151 = vst [vmem:[%s170 + $0xa8] sm:$0xff] %v1126
      %1152 = vst [vmem:[%s170 + $0xb0] sm:$0xff] %v1127
      %1153 = vst [vmem:[%s170 + $0xb8] sm:$0xff] %v1128
      %1154 = vst [vmem:[%s170 + $0xc0] sm:$0xf] %v1129
      %p1155 = scmp.lt.s32.totalorder %s14, 1
      %s1156 = scalar_select %p1155, %s14, 1
      %s1157 = smul.addr %s1156, 25
      %s1158 = smul.addr %s1157, 8
      %s1159 = scalar_lea.vmem %s3, %s1158
      // Predicated region
      $region33: #{lenet5_forward.3} parent=31 // pred_check
        %p1160 = pneg %p100
      $region34: #{lenet5_forward.3} parent=31 // pred_check_branch
        %1162 = sbr.rel (%p1160) target = $region36
      $region35: #{lenet5_forward.3} parent=31 // pred_region
        _
      $region36: #{lenet5_forward.3} parent=31 // pred_fallthru
        _
    $region32: #{lenet5_forward.3} parent=5 // pred_fallthru
      _
    %p1163 = scmp.le.s32.totalorder 2, %s9
    // Predicated region
    $region37: #{lenet5_forward.3} parent=5 // pred_check
      %p1164 = pneg %p1163
    $region38: #{lenet5_forward.3} parent=5 // pred_check_branch
      %1166 = sbr.rel (%p1164) target = $region40
    $region39: #{lenet5_forward.3} parent=5 // pred_region
      %s1167 = ssub.s32 %s9, 2
      // Predicated region
      $region41: #{lenet5_forward.3} parent=39 // pred_check
        %p1168 = pneg %p106
      $region42: #{lenet5_forward.3} parent=39 // pred_check_branch
        %1170 = sbr.rel (%p1168) target = $region44
      $region43: #{lenet5_forward.3} parent=39 // pred_region
        %p1171 = scmp.lt.s32.totalorder %s15, 1
        %s1172 = scalar_select %p1171, %s15, 1
        %s1173 = smul.addr %s1172, 25
        %s1174 = smul.addr %s1173, 8
        %s1175 = scalar_lea.vmem %s3, %s1174
      $region44: #{lenet5_forward.3} parent=39 // pred_fallthru
        _
    $region40: #{lenet5_forward.3} parent=5 // pred_fallthru
      _
  $region6: #{lenet5_forward.3} parent=0 // loop_footer
    %s13 = sadd.s32 1, %s9
  $region7: #{lenet5_forward.3} parent=0 // loop_footer_branch
    %8 = sbr.rel target = $region3
  $region8: #{lenet5_forward.3} parent=0 // loop_exit
    _

// kernel: lenet5_forward.4
$region0: #{lenet5_forward.4}
  #allocation0 [shape = 'u32[]', space=smem, size = 0x4, offset = 0x4, fixed_abs, tag = 'smem constant byte address 0x4 - core index']
  #allocation1 [shape = 'u32[72,128]{1,0:T(1,128)}', space=vmem, size = 0x9000, scoped, tag = 'internal scratch']
  %s0 = inlined_call_operand.vmem [shape: f32[2,4,25,150], index: 0, kind: input, shape index: {}]
  %s1 = inlined_call_operand.vmem [shape: f32[150,128], index: 1, kind: input, shape index: {}]
  %s2 = inlined_call_operand.vmem [shape: f32[1,128], index: 2, kind: input, shape index: {}]
  %s3 = inlined_call_operand.vmem [shape: f32[2,25,128], index: 3, kind: output, shape index: {}]
  %s4 = sld [smem:[#allocation0]]
  $region45: #{lenet5_forward.4} parent=0
    _
  %s6 = ssub.s32 1, %s4
  %s7 = scalar_select 0, %s6, %s4
  loop: start=0, step=1, limit=4
  $region2: #{lenet5_forward.4} parent=0 // loop_pre_header
    _
  $region3: #{lenet5_forward.4} parent=0 // loop_header
    %s9 = sphi 0, %s13
    %p10 = scmp.ge.s32.totalorder %s9, 4
    %s19 = sphi 0, %s21
    %s22 = sphi 0, %s19
    %s23 = sphi 0, %s22
    %s39 = sphi 0, %s23
    %s43 = sphi 0, %s43
    %s45 = sphi 0, %s43
    %s46 = sphi 0, %s45
    %s60 = sphi 0, %s46
    %s64 = sphi 0, %s64
    %s66 = sphi 0, %s64
    %s67 = sphi 0, %s66
    %s81 = sphi 0, %s67
    %s87 = sphi 0, %s89
    %s90 = sphi 0, %s87
    %s91 = sphi 0, %s90
    %s107 = sphi 0, %s91
  $region4: #{lenet5_forward.4} parent=0 // loop_header_branch
    %12 = sbr.rel (%p10) target = $region8
  $region5: #{lenet5_forward.4} parent=0 // loop_body
    %s14 = ssub.s32 %s9, 1
    %s15 = ssub.s32 %s9, 2
    %s16 = sadd.s32 %s9, 1
    %s17 = ssub.s32 %s9, %s16
    %p18 = scmp.eq.s32.totalorder %s17, 0
    %s20 = sadd.s32 %s19, 1
    %s21 = scalar_select %p18, %s19, %s20
    %p24 = pneg %p18
    %p25 = scmp.eq.s32.totalorder %s9, 1
    %p26 = por %p24, %p25
    %p27 = scmp.ne.s32.totalorder %s19, %s22
    %p28 = scmp.eq.s32.totalorder %s9, 0
    %p29 = por %p27, %p28
    %p30 = scmp.ne.s32.totalorder %s19, %s22
    %p31 = scmp.eq.s32.totalorder %s14, 1
    %p32 = por %p30, %p31
    %p33 = scmp.ne.s32.totalorder %s22, %s23
    %p34 = scmp.eq.s32.totalorder %s14, 0
    %p35 = por %p33, %p34
    %p36 = scmp.ne.s32.totalorder %s22, %s23
    %p37 = scmp.eq.s32.totalorder %s15, 1
    %p38 = por %p36, %p37
    %p40 = scmp.ne.s32.totalorder %s23, %s39
    %p41 = scmp.eq.s32.totalorder %s15, 0
    %p42 = por %p40, %p41
    %s44 = sadd.s32 %s43, 1
    %p47 = scmp.eq.s32.totalorder %s9, 1
    %p48 = scmp.ne.s32.totalorder %s43, %s45
    %p49 = scmp.eq.s32.totalorder %s9, 0
    %p50 = por %p48, %p49
    %p51 = scmp.ne.s32.totalorder %s43, %s45
    %p52 = scmp.eq.s32.totalorder %s14, 1
    %p53 = por %p51, %p52
    %p54 = scmp.ne.s32.totalorder %s45, %s46
    %p55 = scmp.eq.s32.totalorder %s14, 0
    %p56 = por %p54, %p55
    %p57 = scmp.ne.s32.totalorder %s45, %s46
    %p58 = scmp.eq.s32.totalorder %s15, 1
    %p59 = por %p57, %p58
    %p61 = scmp.ne.s32.totalorder %s46, %s60
    %p62 = scmp.eq.s32.totalorder %s15, 0
    %p63 = por %p61, %p62
    %s65 = sadd.s32 %s64, 1
    %p68 = scmp.eq.s32.totalorder %s9, 1
    %p69 = scmp.ne.s32.totalorder %s64, %s66
    %p70 = scmp.eq.s32.totalorder %s9, 0
    %p71 = por %p69, %p70
    %p72 = scmp.ne.s32.totalorder %s64, %s66
    %p73 = scmp.eq.s32.totalorder %s14, 1
    %p74 = por %p72, %p73
    %p75 = scmp.ne.s32.totalorder %s66, %s67
    %p76 = scmp.eq.s32.totalorder %s14, 0
    %p77 = por %p75, %p76
    %p78 = scmp.ne.s32.totalorder %s66, %s67
    %p79 = scmp.eq.s32.totalorder %s15, 1
    %p80 = por %p78, %p79
    %p82 = scmp.ne.s32.totalorder %s67, %s81
    %p83 = scmp.eq.s32.totalorder %s15, 0
    %p84 = por %p82, %p83
    %s85 = ssub.s32 %s9, %s16
    %p86 = scmp.eq.s32.totalorder %s85, 0
    %s88 = sadd.s32 %s87, 1
    %s89 = scalar_select %p86, %s87, %s88
    %p92 = pneg %p86
    %p93 = scmp.eq.s32.totalorder %s9, 1
    %p94 = por %p92, %p93
    %p95 = scmp.ne.s32.totalorder %s87, %s90
    %p96 = scmp.eq.s32.totalorder %s9, 0
    %p97 = por %p95, %p96
    %p98 = scmp.ne.s32.totalorder %s87, %s90
    %p99 = scmp.eq.s32.totalorder %s14, 1
    %p100 = por %p98, %p99
    %p101 = scmp.ne.s32.totalorder %s90, %s91
    %p102 = scmp.eq.s32.totalorder %s14, 0
    %p103 = por %p101, %p102
    %p104 = scmp.ne.s32.totalorder %s90, %s91
    %p105 = scmp.eq.s32.totalorder %s15, 1
    %p106 = por %p104, %p105
    %p108 = scmp.ne.s32.totalorder %s91, %s107
    %p109 = scmp.eq.s32.totalorder %s15, 0
    %p110 = por %p108, %p109
    %p111 = scmp.le.s32.totalorder 1, %s9
    %p112 = scmp.lt.s32.totalorder %s9, 3
    %p113 = pnand %p111, %p112
    %p114 = pneg %p113
    // Predicated region
    $region9: #{lenet5_forward.4} parent=5 // pred_check
      _
    $region10: #{lenet5_forward.4} parent=5 // pred_check_branch
      %116 = sbr.rel (%p113) target = $region12
    $region11: #{lenet5_forward.4} parent=5 // pred_region
      %s117 = ssub.s32 %s9, 1
      // Predicated region
      $region13: #{lenet5_forward.4} parent=11 // pred_check
        %p118 = pneg %p56
      $region14: #{lenet5_forward.4} parent=11 // pred_check_branch
        %120 = sbr.rel (%p118) target = $region16
      $region15: #{lenet5_forward.4} parent=11 // pred_region
        _
      $region16: #{lenet5_forward.4} parent=11 // pred_fallthru
        _
      // Predicated region
      $region17: #{lenet5_forward.4} parent=11 // pred_check
        %p121 = pneg %p77
      $region18: #{lenet5_forward.4} parent=11 // pred_check_branch
        %123 = sbr.rel (%p121) target = $region20
      $region19: #{lenet5_forward.4} parent=11 // pred_region
        _
      $region20: #{lenet5_forward.4} parent=11 // pred_fallthru
        _
    $region12: #{lenet5_forward.4} parent=5 // pred_fallthru
      _
    %p124 = scmp.lt.s32.totalorder %s9, 2
    // Predicated region
    $region21: #{lenet5_forward.4} parent=5 // pred_check
      %p125 = pneg %p124
    $region22: #{lenet5_forward.4} parent=5 // pred_check_branch
      %127 = sbr.rel (%p125) target = $region24
    $region23: #{lenet5_forward.4} parent=5 // pred_region
      // Predicated region
      $region25: #{lenet5_forward.4} parent=23 // pred_check
        %p128 = pneg %p29
      $region26: #{lenet5_forward.4} parent=23 // pred_check_branch
        %130 = sbr.rel (%p128) target = $region28
      $region27: #{lenet5_forward.4} parent=23 // pred_region
        %p131 = scmp.lt.s32.totalorder %s9, 1
        %s132 = scalar_select %p131, %s9, 1
        %s133 = smul.addr %s132, 32
        %s134 = smul.addr %s133, 8
        %s135 = scalar_lea.vmem %s0, %s134
      $region28: #{lenet5_forward.4} parent=23 // pred_fallthru
        _
    $region24: #{lenet5_forward.4} parent=5 // pred_fallthru
      _
    %p136 = scmp.le.s32.totalorder 1, %s9
    %p137 = scmp.lt.s32.totalorder %s9, 3
    %p138 = pnand %p136, %p137
    %p139 = pneg %p138
    // Predicated region
    $region29: #{lenet5_forward.4} parent=5 // pred_check
      _
    $region30: #{lenet5_forward.4} parent=5 // pred_check_branch
      %141 = sbr.rel (%p138) target = $region32
    $region31: #{lenet5_forward.4} parent=5 // pred_region
      %s142 = ssub.s32 %s9, 1
      %p143 = scmp.lt.s32.totalorder %s14, 1
      %s144 = scalar_select %p143, %s14, 1
      %s145 = smul.addr %s144, 32
      %s146 = smul.addr %s145, 8
      %s147 = scalar_lea.vmem %s0, %s146
      %p148 = pneg %p35
      %p149 = pneg %p32
      %p150 = pneg %p56
      %p151 = pneg %p53
      %p152 = pneg %p77
      %p153 = pneg %p74
      %p154 = pneg %p103
      %p155 = pneg %p100
      %p156 = scmp.lt.s32.totalorder %s14, 1
      %s157 = scalar_select %p156, %s14, 1
      %s158 = smul.addr %s157, 4
      %s159 = smul.addr %s158, 8
      %s160 = scalar_lea.vmem %s3, %s159
      %p161 = scmp.lt.s32.totalorder %s14, 1
      %s162 = scalar_select %p161, %s14, 1
      %s163 = smul.addr %s162, 32
      %s164 = smul.addr %s163, 8
      %s165 = scalar_lea.vmem %s0, %s164
      %p166 = scmp.lt.s32.totalorder %s14, 1
      %s167 = scalar_select %p166, %s14, 1
      %s168 = smul.addr %s167, 4
      %s169 = smul.addr %s168, 8
      %s170 = scalar_lea.vmem %s3, %s169
      %v171 = vld [vmem:[%s1] sm:$0xff]
      %v172 = vld [vmem:[%s1 + $0x8] sm:$0xff]
      %v173 = vld [vmem:[%s1 + $0x10] sm:$0xff]
      %v174 = vld [vmem:[%s1 + $0x18] sm:$0xff]
      %v175 = vld [vmem:[%s1 + $0x20] sm:$0xff]
      %v176 = vld [vmem:[%s1 + $0x28] sm:$0xff]
      %v177 = vld [vmem:[%s1 + $0x30] sm:$0xff]
      %v178 = vld [vmem:[%s1 + $0x38] sm:$0xff]
      %v179 = vld [vmem:[%s1 + $0x40] sm:$0xff]
      %v180 = vld [vmem:[%s1 + $0x48] sm:$0xff]
      %v181 = vld [vmem:[%s1 + $0x50] sm:$0xff]
      %v182 = vld [vmem:[%s1 + $0x58] sm:$0xff]
      %v183 = vld [vmem:[%s1 + $0x60] sm:$0xff]
      %v184 = vld [vmem:[%s1 + $0x68] sm:$0xff]
      %v185 = vld [vmem:[%s1 + $0x70] sm:$0xff]
      %v186 = vld [vmem:[%s1 + $0x78] sm:$0xff]
      %v187 = vld [vmem:[%s1 + $0x80] sm:$0xff]
      %v188 = vld [vmem:[%s1 + $0x88] sm:$0xff]
      %v189 = vld [vmem:[%s1 + $0x90] sm:$0x3f]
      %v190 = vld [vmem:[%s2] sm:$0x1]
      %v191 = vld [vmem:[%s165] sm:$0xff]
      %v192 = vld [vmem:[%s165 + $0x8] sm:$0xff]
      %v193 = vld [vmem:[%s165 + $0x10] sm:$0xff]
      %v194 = vld [vmem:[%s165 + $0x18] sm:$0xff]
      %v195 = vld [vmem:[%s165 + $0x20] sm:$0xff]
      %v196 = vld [vmem:[%s165 + $0x28] sm:$0xff]
      %v197 = vld [vmem:[%s165 + $0x30] sm:$0x1]
      %v198 = vld [vmem:[%s165 + $0x38] sm:$0x1]
      %v200 = vperm.slane %v190, 0
      %vm202 = vcmask 179200
      %v204 = vsel %vm202, %v192, 0
      %v207 = vsel %vm202, %v194, 0
      %v210 = vsel %vm202, %v196, 0
      %v213 = vsel %vm202, %v198, 0
      %vm215 = vcmask 1045504
      %v217 = vsel %vm215, %v189, 0
      %219 = vmatpush.msra.mxu0 %v186
      %220 = vmatpush.msra.mxu0 %v185
      %221 = vmatpush.msra.mxu0 %v184
      %222 = vmatpush.msra.mxu0 %v183
      %223 = vmatpush.msra.mxu0 %v182
      %224 = vmatpush.msra.mxu0 %v181
      %225 = vmatpush.msra.mxu0 %v180
      %226 = vmatpush.msra.mxu0 %v179
      %227 = vmatpush.msra.mxu0 %v178
      %228 = vmatpush.msra.mxu0 %v177
      %229 = vmatpush.msra.mxu0 %v176
      %230 = vmatpush.msra.mxu0 %v175
      %231 = vmatpush.msra.mxu0 %v174
      %232 = vmatpush.msra.mxu0 %v173
      %233 = vmatpush.msra.mxu0 %v172
      %234 = vmatpush.msra.mxu0 %v171
      %235 = vmatmul.f32.gmra.mxu0 %v191
      %v236 = vpop.f32.mrf.mxu0
      %v237 = vadd.f32 %v200, %v236
      %238 = vmatmul.f32.gmra.mxu0 %v193
      %v239 = vpop.f32.mrf.mxu0
      %v240 = vadd.f32 %v200, %v239
      %241 = vmatmul.f32.gmra.mxu0 %v195
      %v242 = vpop.f32.mrf.mxu0
      %v243 = vadd.f32 %v200, %v242
      %244 = vmatmul.f32.gmra.mxu0 %v197
      %v245 = vpop.f32.mrf.mxu0
      %v246 = vadd.f32 %v200, %v245
      %247 = vdwg.mxu0
      %248 = vmatpush.msra.mxu0 0.0
      %249 = vmatpush.msra.mxu0 0.0
      %250 = vmatpush.msra.mxu0 0.0
      %251 = vmatpush.msra.mxu0 0.0
      %252 = vmatpush.msra.mxu0 0.0
      %253 = vmatpush.msra.mxu0 0.0
      %254 = vmatpush.msra.mxu0 0.0
      %255 = vmatpush.msra.mxu0 0.0
      %256 = vmatpush.msra.mxu0 0.0
      %257 = vmatpush.msra.mxu0 0.0
      %258 = vmatpush.msra.mxu0 0.0
      %259 = vmatpush.msra.mxu0 0.0
      %260 = vmatpush.msra.mxu0 0.0
      %261 = vmatpush.msra.mxu0 %v217
      %262 = vmatpush.msra.mxu0 %v188
      %263 = vmatpush.msra.mxu0 %v187
      %264 = vmatmul.f32.gmra.mxu0 %v204
      %v265 = vpop.f32.mrf.mxu0
      %v266 = vadd.f32 %v237, %v265
      %267 = vmatmul.f32.gmra.mxu0 %v207
      %v268 = vpop.f32.mrf.mxu0
      %v269 = vadd.f32 %v240, %v268
      %270 = vmatmul.f32.gmra.mxu0 %v210
      %v271 = vpop.f32.mrf.mxu0
      %v272 = vadd.f32 %v243, %v271
      %273 = vmatmul.f32.gmra.mxu0 %v213
      %v274 = vpop.f32.mrf.mxu0
      %v275 = vadd.f32 %v246, %v274
      %276 = vdwg.mxu0
      %v277 = vmax.f32 %v266, 0.0
      %v278 = vmax.f32 %v269, 0.0
      %v279 = vmax.f32 %v272, 0.0
      %v280 = vmax.f32 %v275, 0.0
      %s281 = scalar_lea.vmem %s165, 64
      %v282 = vld [vmem:[%s281] sm:$0xff]
      %v283 = vld [vmem:[%s281 + $0x8] sm:$0xff]
      %v284 = vld [vmem:[%s281 + $0x10] sm:$0xff]
      %v285 = vld [vmem:[%s281 + $0x18] sm:$0xff]
      %v286 = vld [vmem:[%s281 + $0x20] sm:$0xff]
      %v287 = vld [vmem:[%s281 + $0x28] sm:$0xff]
      %v288 = vld [vmem:[%s281 + $0x30] sm:$0x1]
      %v289 = vld [vmem:[%s281 + $0x38] sm:$0x1]
      %v291 = vsel %vm202, %v283, 0
      %v294 = vsel %vm202, %v285, 0
      %v297 = vsel %vm202, %v287, 0
      %v300 = vsel %vm202, %v289, 0
      %302 = vmatpush.msra.mxu0 %v186
      %303 = vmatpush.msra.mxu0 %v185
      %304 = vmatpush.msra.mxu0 %v184
      %305 = vmatpush.msra.mxu0 %v183
      %306 = vmatpush.msra.mxu0 %v182
      %307 = vmatpush.msra.mxu0 %v181
      %308 = vmatpush.msra.mxu0 %v180
      %309 = vmatpush.msra.mxu0 %v179
      %310 = vmatpush.msra.mxu0 %v178
      %311 = vmatpush.msra.mxu0 %v177
      %312 = vmatpush.msra.mxu0 %v176
      %313 = vmatpush.msra.mxu0 %v175
      %314 = vmatpush.msra.mxu0 %v174
      %315 = vmatpush.msra.mxu0 %v173
      %316 = vmatpush.msra.mxu0 %v172
      %317 = vmatpush.msra.mxu0 %v171
      %318 = vmatmul.f32.gmra.mxu0 %v282
      %v319 = vpop.f32.mrf.mxu0
      %v320 = vadd.f32 %v200, %v319
      %321 = vmatmul.f32.gmra.mxu0 %v284
      %v322 = vpop.f32.mrf.mxu0
      %v323 = vadd.f32 %v200, %v322
      %324 = vmatmul.f32.gmra.mxu0 %v286
      %v325 = vpop.f32.mrf.mxu0
      %v326 = vadd.f32 %v200, %v325
      %327 = vmatmul.f32.gmra.mxu0 %v288
      %v328 = vpop.f32.mrf.mxu0
      %v329 = vadd.f32 %v200, %v328
      %330 = vdwg.mxu0
      %331 = vmatpush.msra.mxu0 0.0
      %332 = vmatpush.msra.mxu0 0.0
      %333 = vmatpush.msra.mxu0 0.0
      %334 = vmatpush.msra.mxu0 0.0
      %335 = vmatpush.msra.mxu0 0.0
      %336 = vmatpush.msra.mxu0 0.0
      %337 = vmatpush.msra.mxu0 0.0
      %338 = vmatpush.msra.mxu0 0.0
      %339 = vmatpush.msra.mxu0 0.0
      %340 = vmatpush.msra.mxu0 0.0
      %341 = vmatpush.msra.mxu0 0.0
      %342 = vmatpush.msra.mxu0 0.0
      %343 = vmatpush.msra.mxu0 0.0
      %344 = vmatpush.msra.mxu0 %v217
      %345 = vmatpush.msra.mxu0 %v188
      %346 = vmatpush.msra.mxu0 %v187
      %347 = vmatmul.f32.gmra.mxu0 %v291
      %v348 = vpop.f32.mrf.mxu0
      %v349 = vadd.f32 %v320, %v348
      %350 = vmatmul.f32.gmra.mxu0 %v294
      %v351 = vpop.f32.mrf.mxu0
      %v352 = vadd.f32 %v323, %v351
      %353 = vmatmul.f32.gmra.mxu0 %v297
      %v354 = vpop.f32.mrf.mxu0
      %v355 = vadd.f32 %v326, %v354
      %356 = vmatmul.f32.gmra.mxu0 %v300
      %v357 = vpop.f32.mrf.mxu0
      %v358 = vadd.f32 %v329, %v357
      %359 = vdwg.mxu0
      %v360 = vmax.f32 %v349, 0.0
      %v361 = vmax.f32 %v352, 0.0
      %v362 = vmax.f32 %v355, 0.0
      %v363 = vmax.f32 %v358, 0.0
      %v364 = vmax.f32 %v277, %v360
      %v365 = vmax.f32 %v278, %v361
      %v366 = vmax.f32 %v279, %v362
      %v367 = vmax.f32 %v280, %v363
      %s368 = scalar_lea.vmem %s165, 128
      %v369 = vld [vmem:[%s368] sm:$0xff]
      %v370 = vld [vmem:[%s368 + $0x8] sm:$0xff]
      %v371 = vld [vmem:[%s368 + $0x10] sm:$0xff]
      %v372 = vld [vmem:[%s368 + $0x18] sm:$0xff]
      %v373 = vld [vmem:[%s368 + $0x20] sm:$0xff]
      %v374 = vld [vmem:[%s368 + $0x28] sm:$0xff]
      %v375 = vld [vmem:[%s368 + $0x30] sm:$0x1]
      %v376 = vld [vmem:[%s368 + $0x38] sm:$0x1]
      %v378 = vsel %vm202, %v370, 0
      %v381 = vsel %vm202, %v372, 0
      %v384 = vsel %vm202, %v374, 0
      %v387 = vsel %vm202, %v376, 0
      %389 = vmatpush.msra.mxu0 %v186
      %390 = vmatpush.msra.mxu0 %v185
      %391 = vmatpush.msra.mxu0 %v184
      %392 = vmatpush.msra.mxu0 %v183
      %393 = vmatpush.msra.mxu0 %v182
      %394 = vmatpush.msra.mxu0 %v181
      %395 = vmatpush.msra.mxu0 %v180
      %396 = vmatpush.msra.mxu0 %v179
      %397 = vmatpush.msra.mxu0 %v178
      %398 = vmatpush.msra.mxu0 %v177
      %399 = vmatpush.msra.mxu0 %v176
      %400 = vmatpush.msra.mxu0 %v175
      %401 = vmatpush.msra.mxu0 %v174
      %402 = vmatpush.msra.mxu0 %v173
      %403 = vmatpush.msra.mxu0 %v172
      %404 = vmatpush.msra.mxu0 %v171
      %405 = vmatmul.f32.gmra.mxu0 %v369
      %v406 = vpop.f32.mrf.mxu0
      %v407 = vadd.f32 %v200, %v406
      %408 = vmatmul.f32.gmra.mxu0 %v371
      %v409 = vpop.f32.mrf.mxu0
      %v410 = vadd.f32 %v200, %v409
      %411 = vmatmul.f32.gmra.mxu0 %v373
      %v412 = vpop.f32.mrf.mxu0
      %v413 = vadd.f32 %v200, %v412
      %414 = vmatmul.f32.gmra.mxu0 %v375
      %v415 = vpop.f32.mrf.mxu0
      %v416 = vadd.f32 %v200, %v415
      %417 = vdwg.mxu0
      %418 = vmatpush.msra.mxu0 0.0
      %419 = vmatpush.msra.mxu0 0.0
      %420 = vmatpush.msra.mxu0 0.0
      %421 = vmatpush.msra.mxu0 0.0
      %422 = vmatpush.msra.mxu0 0.0
      %423 = vmatpush.msra.mxu0 0.0
      %424 = vmatpush.msra.mxu0 0.0
      %425 = vmatpush.msra.mxu0 0.0
      %426 = vmatpush.msra.mxu0 0.0
      %427 = vmatpush.msra.mxu0 0.0
      %428 = vmatpush.msra.mxu0 0.0
      %429 = vmatpush.msra.mxu0 0.0
      %430 = vmatpush.msra.mxu0 0.0
      %431 = vmatpush.msra.mxu0 %v217
      %432 = vmatpush.msra.mxu0 %v188
      %433 = vmatpush.msra.mxu0 %v187
      %434 = vmatmul.f32.gmra.mxu0 %v378
      %v435 = vpop.f32.mrf.mxu0
      %v436 = vadd.f32 %v407, %v435
      %437 = vmatmul.f32.gmra.mxu0 %v381
      %v438 = vpop.f32.mrf.mxu0
      %v439 = vadd.f32 %v410, %v438
      %440 = vmatmul.f32.gmra.mxu0 %v384
      %v441 = vpop.f32.mrf.mxu0
      %v442 = vadd.f32 %v413, %v441
      %443 = vmatmul.f32.gmra.mxu0 %v387
      %v444 = vpop.f32.mrf.mxu0
      %v445 = vadd.f32 %v416, %v444
      %446 = vdwg.mxu0
      %v447 = vmax.f32 %v436, 0.0
      %v448 = vmax.f32 %v439, 0.0
      %v449 = vmax.f32 %v442, 0.0
      %v450 = vmax.f32 %v445, 0.0
      %v451 = vmax.f32 %v364, %v447
      %v452 = vmax.f32 %v365, %v448
      %v453 = vmax.f32 %v366, %v449
      %v454 = vmax.f32 %v367, %v450
      %s455 = scalar_lea.vmem %s165, 192
      %v456 = vld [vmem:[%s455] sm:$0xff]
      %v457 = vld [vmem:[%s455 + $0x8] sm:$0xff]
      %v458 = vld [vmem:[%s455 + $0x10] sm:$0xff]
      %v459 = vld [vmem:[%s455 + $0x18] sm:$0xff]
      %v460 = vld [vmem:[%s455 + $0x20] sm:$0xff]
      %v461 = vld [vmem:[%s455 + $0x28] sm:$0xff]
      %v462 = vld [vmem:[%s455 + $0x30] sm:$0x1]
      %v463 = vld [vmem:[%s455 + $0x38] sm:$0x1]
      %v465 = vsel %vm202, %v457, 0
      %v468 = vsel %vm202, %v459, 0
      %v471 = vsel %vm202, %v461, 0
      %v474 = vsel %vm202, %v463, 0
      %476 = vmatpush.msra.mxu0 %v186
      %477 = vmatpush.msra.mxu0 %v185
      %478 = vmatpush.msra.mxu0 %v184
      %479 = vmatpush.msra.mxu0 %v183
      %480 = vmatpush.msra.mxu0 %v182
      %481 = vmatpush.msra.mxu0 %v181
      %482 = vmatpush.msra.mxu0 %v180
      %483 = vmatpush.msra.mxu0 %v179
      %484 = vmatpush.msra.mxu0 %v178
      %485 = vmatpush.msra.mxu0 %v177
      %486 = vmatpush.msra.mxu0 %v176
      %487 = vmatpush.msra.mxu0 %v175
      %488 = vmatpush.msra.mxu0 %v174
      %489 = vmatpush.msra.mxu0 %v173
      %490 = vmatpush.msra.mxu0 %v172
      %491 = vmatpush.msra.mxu0 %v171
      %492 = vmatmul.f32.gmra.mxu0 %v456
      %v493 = vpop.f32.mrf.mxu0
      %v494 = vadd.f32 %v200, %v493
      %495 = vmatmul.f32.gmra.mxu0 %v458
      %v496 = vpop.f32.mrf.mxu0
      %v497 = vadd.f32 %v200, %v496
      %498 = vmatmul.f32.gmra.mxu0 %v460
      %v499 = vpop.f32.mrf.mxu0
      %v500 = vadd.f32 %v200, %v499
      %501 = vmatmul.f32.gmra.mxu0 %v462
      %v502 = vpop.f32.mrf.mxu0
      %v503 = vadd.f32 %v200, %v502
      %504 = vdwg.mxu0
      %505 = vmatpush.msra.mxu0 0.0
      %506 = vmatpush.msra.mxu0 0.0
      %507 = vmatpush.msra.mxu0 0.0
      %508 = vmatpush.msra.mxu0 0.0
      %509 = vmatpush.msra.mxu0 0.0
      %510 = vmatpush.msra.mxu0 0.0
      %511 = vmatpush.msra.mxu0 0.0
      %512 = vmatpush.msra.mxu0 0.0
      %513 = vmatpush.msra.mxu0 0.0
      %514 = vmatpush.msra.mxu0 0.0
      %515 = vmatpush.msra.mxu0 0.0
      %516 = vmatpush.msra.mxu0 0.0
      %517 = vmatpush.msra.mxu0 0.0
      %518 = vmatpush.msra.mxu0 %v217
      %519 = vmatpush.msra.mxu0 %v188
      %520 = vmatpush.msra.mxu0 %v187
      %521 = vmatmul.f32.gmra.mxu0 %v465
      %v522 = vpop.f32.mrf.mxu0
      %v523 = vadd.f32 %v494, %v522
      %524 = vmatmul.f32.gmra.mxu0 %v468
      %v525 = vpop.f32.mrf.mxu0
      %v526 = vadd.f32 %v497, %v525
      %527 = vmatmul.f32.gmra.mxu0 %v471
      %v528 = vpop.f32.mrf.mxu0
      %v529 = vadd.f32 %v500, %v528
      %530 = vmatmul.f32.gmra.mxu0 %v474
      %v531 = vpop.f32.mrf.mxu0
      %v532 = vadd.f32 %v503, %v531
      %533 = vdwg.mxu0
      %v534 = vmax.f32 %v523, 0.0
      %v535 = vmax.f32 %v526, 0.0
      %v536 = vmax.f32 %v529, 0.0
      %v537 = vmax.f32 %v532, 0.0
      %v538 = vmax.f32 %v451, %v534
      %v539 = vmax.f32 %v452, %v535
      %v540 = vmax.f32 %v453, %v536
      %v541 = vmax.f32 %v454, %v537
      %542 = vst [vmem:[%s170] sm:$0xff] %v538
      %543 = vst [vmem:[%s170 + $0x8] sm:$0xff] %v539
      %544 = vst [vmem:[%s170 + $0x10] sm:$0xff] %v540
      %545 = vst [vmem:[%s170 + $0x18] sm:$0x1] %v541
      %p546 = scmp.lt.s32.totalorder %s14, 1
      %s547 = scalar_select %p546, %s14, 1
      %s548 = smul.addr %s547, 4
      %s549 = smul.addr %s548, 8
      %s550 = scalar_lea.vmem %s3, %s549
      // Predicated region
      $region33: #{lenet5_forward.4} parent=31 // pred_check
        %p551 = pneg %p100
      $region34: #{lenet5_forward.4} parent=31 // pred_check_branch
        %553 = sbr.rel (%p551) target = $region36
      $region35: #{lenet5_forward.4} parent=31 // pred_region
        _
      $region36: #{lenet5_forward.4} parent=31 // pred_fallthru
        _
    $region32: #{lenet5_forward.4} parent=5 // pred_fallthru
      _
    %p554 = scmp.le.s32.totalorder 2, %s9
    // Predicated region
    $region37: #{lenet5_forward.4} parent=5 // pred_check
      %p555 = pneg %p554
    $region38: #{lenet5_forward.4} parent=5 // pred_check_branch
      %557 = sbr.rel (%p555) target = $region40
    $region39: #{lenet5_forward.4} parent=5 // pred_region
      %s558 = ssub.s32 %s9, 2
      // Predicated region
      $region41: #{lenet5_forward.4} parent=39 // pred_check
        %p559 = pneg %p106
      $region42: #{lenet5_forward.4} parent=39 // pred_check_branch
        %561 = sbr.rel (%p559) target = $region44
      $region43: #{lenet5_forward.4} parent=39 // pred_region
        %p562 = scmp.lt.s32.totalorder %s15, 1
        %s563 = scalar_select %p562, %s15, 1
        %s564 = smul.addr %s563, 4
        %s565 = smul.addr %s564, 8
        %s566 = scalar_lea.vmem %s3, %s565
      $region44: #{lenet5_forward.4} parent=39 // pred_fallthru
        _
    $region40: #{lenet5_forward.4} parent=5 // pred_fallthru
      _
  $region6: #{lenet5_forward.4} parent=0 // loop_footer
    %s13 = sadd.s32 1, %s9
  $region7: #{lenet5_forward.4} parent=0 // loop_footer_branch
    %8 = sbr.rel target = $region3
  $region8: #{lenet5_forward.4} parent=0 // loop_exit
    _

// kernel: lenet5_forward.5
$region0: #{lenet5_forward.5}
  #allocation0 [shape = 'u32[]', space=smem, size = 0x4, offset = 0x4, fixed_abs, tag = 'smem constant byte address 0x4 - core index']
  #allocation1 [shape = 'u32[72,128]{1,0:T(1,128)}', space=vmem, size = 0x9000, scoped, tag = 'internal scratch']
  %s0 = inlined_call_operand.vmem [shape: f32[8,3200], index: 0, kind: input, shape index: {}]
  %s1 = inlined_call_operand.vmem [shape: f32[3200,128], index: 1, kind: input, shape index: {}]
  %s2 = inlined_call_operand.vmem [shape: f32[1,128], index: 2, kind: input, shape index: {}]
  %s3 = inlined_call_operand.vmem [shape: f32[128,128], index: 3, kind: input, shape index: {}]
  %s4 = inlined_call_operand.vmem [shape: f32[1,128], index: 4, kind: input, shape index: {}]
  %s5 = inlined_call_operand.vmem [shape: f32[128,128], index: 5, kind: input, shape index: {}]
  %s6 = inlined_call_operand.vmem [shape: f32[1,128], index: 6, kind: input, shape index: {}]
  %s7 = inlined_call_operand.vmem [shape: f32[8,128], index: 7, kind: output, shape index: {}]
  %s8 = sld [smem:[#allocation0]]
  $region38: #{lenet5_forward.5} parent=0
    _
  %s10 = ssub.s32 1, %s8
  %s11 = scalar_select 0, %s10, %s8
  // Predicated region
  $region2: #{lenet5_forward.5} parent=0 // pred_check
    _
  $region3: #{lenet5_forward.5} parent=0 // pred_check_branch
    %13 = sbr.rel (0) target = $region5
  $region4: #{lenet5_forward.5} parent=0 // pred_region
    _
  $region5: #{lenet5_forward.5} parent=0 // pred_fallthru
    _
  // Predicated region
  $region6: #{lenet5_forward.5} parent=0 // pred_check
    _
  $region7: #{lenet5_forward.5} parent=0 // pred_check_branch
    %15 = sbr.rel (0) target = $region9
  $region8: #{lenet5_forward.5} parent=0 // pred_region
    _
  $region9: #{lenet5_forward.5} parent=0 // pred_fallthru
    _
  // Predicated region
  $region10: #{lenet5_forward.5} parent=0 // pred_check
    _
  $region11: #{lenet5_forward.5} parent=0 // pred_check_branch
    %17 = sbr.rel (0) target = $region13
  $region12: #{lenet5_forward.5} parent=0 // pred_region
    _
  $region13: #{lenet5_forward.5} parent=0 // pred_fallthru
    _
  // Predicated region
  $region14: #{lenet5_forward.5} parent=0 // pred_check
    _
  $region15: #{lenet5_forward.5} parent=0 // pred_check_branch
    %19 = sbr.rel (0) target = $region17
  $region16: #{lenet5_forward.5} parent=0 // pred_region
    _
  $region17: #{lenet5_forward.5} parent=0 // pred_fallthru
    _
  // Predicated region
  $region18: #{lenet5_forward.5} parent=0 // pred_check
    _
  $region19: #{lenet5_forward.5} parent=0 // pred_check_branch
    %21 = sbr.rel (0) target = $region21
  $region20: #{lenet5_forward.5} parent=0 // pred_region
    _
  $region21: #{lenet5_forward.5} parent=0 // pred_fallthru
    _
  // Predicated region
  $region22: #{lenet5_forward.5} parent=0 // pred_check
    _
  $region23: #{lenet5_forward.5} parent=0 // pred_check_branch
    %23 = sbr.rel (0) target = $region25
  $region24: #{lenet5_forward.5} parent=0 // pred_region
    _
  $region25: #{lenet5_forward.5} parent=0 // pred_fallthru
    _
  // Predicated region
  $region26: #{lenet5_forward.5} parent=0 // pred_check
    _
  $region27: #{lenet5_forward.5} parent=0 // pred_check_branch
    %25 = sbr.rel (0) target = $region29
  $region28: #{lenet5_forward.5} parent=0 // pred_region
    _
  $region29: #{lenet5_forward.5} parent=0 // pred_fallthru
    _
  %v26 = vld [vmem:[%s0] sm:$0xff]
  %v27 = vld [vmem:[%s0 + $0x8] sm:$0xff]
  %v28 = vld [vmem:[%s0 + $0x10] sm:$0xff]
  %v29 = vld [vmem:[%s0 + $0x18] sm:$0xff]
  %v30 = vld [vmem:[%s0 + $0x20] sm:$0xff]
  %v31 = vld [vmem:[%s0 + $0x28] sm:$0xff]
  %v32 = vld [vmem:[%s0 + $0x30] sm:$0xff]
  %v33 = vld [vmem:[%s0 + $0x38] sm:$0xff]
  %v34 = vld [vmem:[%s0 + $0x40] sm:$0xff]
  %v35 = vld [vmem:[%s0 + $0x48] sm:$0xff]
  %v36 = vld [vmem:[%s0 + $0x50] sm:$0xff]
  %v37 = vld [vmem:[%s0 + $0x58] sm:$0xff]
  %v38 = vld [vmem:[%s0 + $0x60] sm:$0xff]
  %v39 = vld [vmem:[%s0 + $0x68] sm:$0xff]
  %v40 = vld [vmem:[%s0 + $0x70] sm:$0xff]
  %v41 = vld [vmem:[%s0 + $0x78] sm:$0xff]
  %v42 = vld [vmem:[%s0 + $0x80] sm:$0xff]
  %v43 = vld [vmem:[%s0 + $0x88] sm:$0xff]
  %v44 = vld [vmem:[%s0 + $0x90] sm:$0xff]
  %v45 = vld [vmem:[%s0 + $0x98] sm:$0xff]
  %v46 = vld [vmem:[%s0 + $0xa0] sm:$0xff]
  %v47 = vld [vmem:[%s0 + $0xa8] sm:$0xff]
  %v48 = vld [vmem:[%s0 + $0xb0] sm:$0xff]
  %v49 = vld [vmem:[%s0 + $0xb8] sm:$0xff]
  %v50 = vld [vmem:[%s0 + $0xc0] sm:$0xff]
  %v51 = vld [vmem:[%s1] sm:$0xff]
  %v52 = vld [vmem:[%s1 + $0x8] sm:$0xff]
  %v53 = vld [vmem:[%s1 + $0x10] sm:$0xff]
  %v54 = vld [vmem:[%s1 + $0x18] sm:$0xff]
  %v55 = vld [vmem:[%s1 + $0x20] sm:$0xff]
  %v56 = vld [vmem:[%s1 + $0x28] sm:$0xff]
  %v57 = vld [vmem:[%s1 + $0x30] sm:$0xff]
  %v58 = vld [vmem:[%s1 + $0x38] sm:$0xff]
  %v59 = vld [vmem:[%s1 + $0x40] sm:$0xff]
  %v60 = vld [vmem:[%s1 + $0x48] sm:$0xff]
  %v61 = vld [vmem:[%s1 + $0x50] sm:$0xff]
  %v62 = vld [vmem:[%s1 + $0x58] sm:$0xff]
  %v63 = vld [vmem:[%s1 + $0x60] sm:$0xff]
  %v64 = vld [vmem:[%s1 + $0x68] sm:$0xff]
  %v65 = vld [vmem:[%s1 + $0x70] sm:$0xff]
  %v66 = vld [vmem:[%s1 + $0x78] sm:$0xff]
  %v67 = vld [vmem:[%s1 + $0x80] sm:$0xff]
  %v68 = vld [vmem:[%s1 + $0x88] sm:$0xff]
  %v69 = vld [vmem:[%s1 + $0x90] sm:$0xff]
  %v70 = vld [vmem:[%s1 + $0x98] sm:$0xff]
  %v71 = vld [vmem:[%s1 + $0xa0] sm:$0xff]
  %v72 = vld [vmem:[%s1 + $0xa8] sm:$0xff]
  %v73 = vld [vmem:[%s1 + $0xb0] sm:$0xff]
  %v74 = vld [vmem:[%s1 + $0xb8] sm:$0xff]
  %v75 = vld [vmem:[%s1 + $0xc0] sm:$0xff]
  %v76 = vld [vmem:[%s1 + $0xc8] sm:$0xff]
  %v77 = vld [vmem:[%s1 + $0xd0] sm:$0xff]
  %v78 = vld [vmem:[%s1 + $0xd8] sm:$0xff]
  %v79 = vld [vmem:[%s1 + $0xe0] sm:$0xff]
  %v80 = vld [vmem:[%s1 + $0xe8] sm:$0xff]
  %v81 = vld [vmem:[%s1 + $0xf0] sm:$0xff]
  %v82 = vld [vmem:[%s1 + $0xf8] sm:$0xff]
  %v83 = vld [vmem:[%s1 + $0x100] sm:$0xff]
  %v84 = vld [vmem:[%s1 + $0x108] sm:$0xff]
  %v85 = vld [vmem:[%s1 + $0x110] sm:$0xff]
  %v86 = vld [vmem:[%s1 + $0x118] sm:$0xff]
  %v87 = vld [vmem:[%s1 + $0x120] sm:$0xff]
  %v88 = vld [vmem:[%s1 + $0x128] sm:$0xff]
  %v89 = vld [vmem:[%s1 + $0x130] sm:$0xff]
  %v90 = vld [vmem:[%s1 + $0x138] sm:$0xff]
  %v91 = vld [vmem:[%s1 + $0x140] sm:$0xff]
  %v92 = vld [vmem:[%s1 + $0x148] sm:$0xff]
  %v93 = vld [vmem:[%s1 + $0x150] sm:$0xff]
  %v94 = vld [vmem:[%s1 + $0x158] sm:$0xff]
  %v95 = vld [vmem:[%s1 + $0x160] sm:$0xff]
  %v96 = vld [vmem:[%s1 + $0x168] sm:$0xff]
  %v97 = vld [vmem:[%s1 + $0x170] sm:$0xff]
  %v98 = vld [vmem:[%s1 + $0x178] sm:$0xff]
  %v99 = vld [vmem:[%s1 + $0x180] sm:$0xff]
  %v100 = vld [vmem:[%s1 + $0x188] sm:$0xff]
  %v101 = vld [vmem:[%s1 + $0x190] sm:$0xff]
  %v102 = vld [vmem:[%s1 + $0x198] sm:$0xff]
  %v103 = vld [vmem:[%s1 + $0x1a0] sm:$0xff]
  %v104 = vld [vmem:[%s1 + $0x1a8] sm:$0xff]
  %v105 = vld [vmem:[%s1 + $0x1b0] sm:$0xff]
  %v106 = vld [vmem:[%s1 + $0x1b8] sm:$0xff]
  %v107 = vld [vmem:[%s1 + $0x1c0] sm:$0xff]
  %v108 = vld [vmem:[%s1 + $0x1c8] sm:$0xff]
  %v109 = vld [vmem:[%s1 + $0x1d0] sm:$0xff]
  %v110 = vld [vmem:[%s1 + $0x1d8] sm:$0xff]
  %v111 = vld [vmem:[%s1 + $0x1e0] sm:$0xff]
  %v112 = vld [vmem:[%s1 + $0x1e8] sm:$0xff]
  %v113 = vld [vmem:[%s1 + $0x1f0] sm:$0xff]
  %v114 = vld [vmem:[%s1 + $0x1f8] sm:$0xff]
  %v115 = vld [vmem:[%s1 + $0x200] sm:$0xff]
  %v116 = vld [vmem:[%s1 + $0x208] sm:$0xff]
  %v117 = vld [vmem:[%s1 + $0x210] sm:$0xff]
  %v118 = vld [vmem:[%s1 + $0x218] sm:$0xff]
  %v119 = vld [vmem:[%s1 + $0x220] sm:$0xff]
  %v120 = vld [vmem:[%s1 + $0x228] sm:$0xff]
  %v121 = vld [vmem:[%s1 + $0x230] sm:$0xff]
  %v122 = vld [vmem:[%s1 + $0x238] sm:$0xff]
  %v123 = vld [vmem:[%s1 + $0x240] sm:$0xff]
  %v124 = vld [vmem:[%s1 + $0x248] sm:$0xff]
  %v125 = vld [vmem:[%s1 + $0x250] sm:$0xff]
  %v126 = vld [vmem:[%s1 + $0x258] sm:$0xff]
  %v127 = vld [vmem:[%s1 + $0x260] sm:$0xff]
  %v128 = vld [vmem:[%s1 + $0x268] sm:$0xff]
  %v129 = vld [vmem:[%s1 + $0x270] sm:$0xff]
  %v130 = vld [vmem:[%s1 + $0x278] sm:$0xff]
  %v131 = vld [vmem:[%s1 + $0x280] sm:$0xff]
  %v132 = vld [vmem:[%s1 + $0x288] sm:$0xff]
  %v133 = vld [vmem:[%s1 + $0x290] sm:$0xff]
  %v134 = vld [vmem:[%s1 + $0x298] sm:$0xff]
  %v135 = vld [vmem:[%s1 + $0x2a0] sm:$0xff]
  %v136 = vld [vmem:[%s1 + $0x2a8] sm:$0xff]
  %v137 = vld [vmem:[%s1 + $0x2b0] sm:$0xff]
  %v138 = vld [vmem:[%s1 + $0x2b8] sm:$0xff]
  %v139 = vld [vmem:[%s1 + $0x2c0] sm:$0xff]
  %v140 = vld [vmem:[%s1 + $0x2c8] sm:$0xff]
  %v141 = vld [vmem:[%s1 + $0x2d0] sm:$0xff]
  %v142 = vld [vmem:[%s1 + $0x2d8] sm:$0xff]
  %v143 = vld [vmem:[%s1 + $0x2e0] sm:$0xff]
  %v144 = vld [vmem:[%s1 + $0x2e8] sm:$0xff]
  %v145 = vld [vmem:[%s1 + $0x2f0] sm:$0xff]
  %v146 = vld [vmem:[%s1 + $0x2f8] sm:$0xff]
  %v147 = vld [vmem:[%s1 + $0x300] sm:$0xff]
  %v148 = vld [vmem:[%s1 + $0x308] sm:$0xff]
  %v149 = vld [vmem:[%s1 + $0x310] sm:$0xff]
  %v150 = vld [vmem:[%s1 + $0x318] sm:$0xff]
  %v151 = vld [vmem:[%s1 + $0x320] sm:$0xff]
  %v152 = vld [vmem:[%s1 + $0x328] sm:$0xff]
  %v153 = vld [vmem:[%s1 + $0x330] sm:$0xff]
  %v154 = vld [vmem:[%s1 + $0x338] sm:$0xff]
  %v155 = vld [vmem:[%s1 + $0x340] sm:$0xff]
  %v156 = vld [vmem:[%s1 + $0x348] sm:$0xff]
  %v157 = vld [vmem:[%s1 + $0x350] sm:$0xff]
  %v158 = vld [vmem:[%s1 + $0x358] sm:$0xff]
  %v159 = vld [vmem:[%s1 + $0x360] sm:$0xff]
  %v160 = vld [vmem:[%s1 + $0x368] sm:$0xff]
  %v161 = vld [vmem:[%s1 + $0x370] sm:$0xff]
  %v162 = vld [vmem:[%s1 + $0x378] sm:$0xff]
  %v163 = vld [vmem:[%s1 + $0x380] sm:$0xff]
  %v164 = vld [vmem:[%s1 + $0x388] sm:$0xff]
  %v165 = vld [vmem:[%s1 + $0x390] sm:$0xff]
  %v166 = vld [vmem:[%s1 + $0x398] sm:$0xff]
  %v167 = vld [vmem:[%s1 + $0x3a0] sm:$0xff]
  %v168 = vld [vmem:[%s1 + $0x3a8] sm:$0xff]
  %v169 = vld [vmem:[%s1 + $0x3b0] sm:$0xff]
  %v170 = vld [vmem:[%s1 + $0x3b8] sm:$0xff]
  %v171 = vld [vmem:[%s1 + $0x3c0] sm:$0xff]
  %v172 = vld [vmem:[%s1 + $0x3c8] sm:$0xff]
  %v173 = vld [vmem:[%s1 + $0x3d0] sm:$0xff]
  %v174 = vld [vmem:[%s1 + $0x3d8] sm:$0xff]
  %v175 = vld [vmem:[%s1 + $0x3e0] sm:$0xff]
  %v176 = vld [vmem:[%s1 + $0x3e8] sm:$0xff]
  %v177 = vld [vmem:[%s1 + $0x3f0] sm:$0xff]
  %v178 = vld [vmem:[%s1 + $0x3f8] sm:$0xff]
  %v179 = vld [vmem:[%s1 + $0x400] sm:$0xff]
  %v180 = vld [vmem:[%s1 + $0x408] sm:$0xff]
  %v181 = vld [vmem:[%s1 + $0x410] sm:$0xff]
  %v182 = vld [vmem:[%s1 + $0x418] sm:$0xff]
  %v183 = vld [vmem:[%s1 + $0x420] sm:$0xff]
  %v184 = vld [vmem:[%s1 + $0x428] sm:$0xff]
  %v185 = vld [vmem:[%s1 + $0x430] sm:$0xff]
  %v186 = vld [vmem:[%s1 + $0x438] sm:$0xff]
  %v187 = vld [vmem:[%s1 + $0x440] sm:$0xff]
  %v188 = vld [vmem:[%s1 + $0x448] sm:$0xff]
  %v189 = vld [vmem:[%s1 + $0x450] sm:$0xff]
  %v190 = vld [vmem:[%s1 + $0x458] sm:$0xff]
  %v191 = vld [vmem:[%s1 + $0x460] sm:$0xff]
  %v192 = vld [vmem:[%s1 + $0x468] sm:$0xff]
  %v193 = vld [vmem:[%s1 + $0x470] sm:$0xff]
  %v194 = vld [vmem:[%s1 + $0x478] sm:$0xff]
  %v195 = vld [vmem:[%s1 + $0x480] sm:$0xff]
  %v196 = vld [vmem:[%s1 + $0x488] sm:$0xff]
  %v197 = vld [vmem:[%s1 + $0x490] sm:$0xff]
  %v198 = vld [vmem:[%s1 + $0x498] sm:$0xff]
  %v199 = vld [vmem:[%s1 + $0x4a0] sm:$0xff]
  %v200 = vld [vmem:[%s1 + $0x4a8] sm:$0xff]
  %v201 = vld [vmem:[%s1 + $0x4b0] sm:$0xff]
  %v202 = vld [vmem:[%s1 + $0x4b8] sm:$0xff]
  %v203 = vld [vmem:[%s1 + $0x4c0] sm:$0xff]
  %v204 = vld [vmem:[%s1 + $0x4c8] sm:$0xff]
  %v205 = vld [vmem:[%s1 + $0x4d0] sm:$0xff]
  %v206 = vld [vmem:[%s1 + $0x4d8] sm:$0xff]
  %v207 = vld [vmem:[%s1 + $0x4e0] sm:$0xff]
  %v208 = vld [vmem:[%s1 + $0x4e8] sm:$0xff]
  %v209 = vld [vmem:[%s1 + $0x4f0] sm:$0xff]
  %v210 = vld [vmem:[%s1 + $0x4f8] sm:$0xff]
  %v211 = vld [vmem:[%s1 + $0x500] sm:$0xff]
  %v212 = vld [vmem:[%s1 + $0x508] sm:$0xff]
  %v213 = vld [vmem:[%s1 + $0x510] sm:$0xff]
  %v214 = vld [vmem:[%s1 + $0x518] sm:$0xff]
  %v215 = vld [vmem:[%s1 + $0x520] sm:$0xff]
  %v216 = vld [vmem:[%s1 + $0x528] sm:$0xff]
  %v217 = vld [vmem:[%s1 + $0x530] sm:$0xff]
  %v218 = vld [vmem:[%s1 + $0x538] sm:$0xff]
  %v219 = vld [vmem:[%s1 + $0x540] sm:$0xff]
  %v220 = vld [vmem:[%s1 + $0x548] sm:$0xff]
  %v221 = vld [vmem:[%s1 + $0x550] sm:$0xff]
  %v222 = vld [vmem:[%s1 + $0x558] sm:$0xff]
  %v223 = vld [vmem:[%s1 + $0x560] sm:$0xff]
  %v224 = vld [vmem:[%s1 + $0x568] sm:$0xff]
  %v225 = vld [vmem:[%s1 + $0x570] sm:$0xff]
  %v226 = vld [vmem:[%s1 + $0x578] sm:$0xff]
  %v227 = vld [vmem:[%s1 + $0x580] sm:$0xff]
  %v228 = vld [vmem:[%s1 + $0x588] sm:$0xff]
  %v229 = vld [vmem:[%s1 + $0x590] sm:$0xff]
  %v230 = vld [vmem:[%s1 + $0x598] sm:$0xff]
  %v231 = vld [vmem:[%s1 + $0x5a0] sm:$0xff]
  %v232 = vld [vmem:[%s1 + $0x5a8] sm:$0xff]
  %v233 = vld [vmem:[%s1 + $0x5b0] sm:$0xff]
  %v234 = vld [vmem:[%s1 + $0x5b8] sm:$0xff]
  %v235 = vld [vmem:[%s1 + $0x5c0] sm:$0xff]
  %v236 = vld [vmem:[%s1 + $0x5c8] sm:$0xff]
  %v237 = vld [vmem:[%s1 + $0x5d0] sm:$0xff]
  %v238 = vld [vmem:[%s1 + $0x5d8] sm:$0xff]
  %v239 = vld [vmem:[%s1 + $0x5e0] sm:$0xff]
  %v240 = vld [vmem:[%s1 + $0x5e8] sm:$0xff]
  %v241 = vld [vmem:[%s1 + $0x5f0] sm:$0xff]
  %v242 = vld [vmem:[%s1 + $0x5f8] sm:$0xff]
  %v243 = vld [vmem:[%s1 + $0x600] sm:$0xff]
  %v244 = vld [vmem:[%s1 + $0x608] sm:$0xff]
  %v245 = vld [vmem:[%s1 + $0x610] sm:$0xff]
  %v246 = vld [vmem:[%s1 + $0x618] sm:$0xff]
  %v247 = vld [vmem:[%s1 + $0x620] sm:$0xff]
  %v248 = vld [vmem:[%s1 + $0x628] sm:$0xff]
  %v249 = vld [vmem:[%s1 + $0x630] sm:$0xff]
  %v250 = vld [vmem:[%s1 + $0x638] sm:$0xff]
  %v251 = vld [vmem:[%s1 + $0x640] sm:$0xff]
  %v252 = vld [vmem:[%s1 + $0x648] sm:$0xff]
  %v253 = vld [vmem:[%s1 + $0x650] sm:$0xff]
  %v254 = vld [vmem:[%s1 + $0x658] sm:$0xff]
  %v255 = vld [vmem:[%s1 + $0x660] sm:$0xff]
  %v256 = vld [vmem:[%s1 + $0x668] sm:$0xff]
  %v257 = vld [vmem:[%s1 + $0x670] sm:$0xff]
  %v258 = vld [vmem:[%s1 + $0x678] sm:$0xff]
  %v259 = vld [vmem:[%s1 + $0x680] sm:$0xff]
  %v260 = vld [vmem:[%s1 + $0x688] sm:$0xff]
  %v261 = vld [vmem:[%s1 + $0x690] sm:$0xff]
  %v262 = vld [vmem:[%s1 + $0x698] sm:$0xff]
  %v263 = vld [vmem:[%s1 + $0x6a0] sm:$0xff]
  %v264 = vld [vmem:[%s1 + $0x6a8] sm:$0xff]
  %v265 = vld [vmem:[%s1 + $0x6b0] sm:$0xff]
  %v266 = vld [vmem:[%s1 + $0x6b8] sm:$0xff]
  %v267 = vld [vmem:[%s1 + $0x6c0] sm:$0xff]
  %v268 = vld [vmem:[%s1 + $0x6c8] sm:$0xff]
  %v269 = vld [vmem:[%s1 + $0x6d0] sm:$0xff]
  %v270 = vld [vmem:[%s1 + $0x6d8] sm:$0xff]
  %v271 = vld [vmem:[%s1 + $0x6e0] sm:$0xff]
  %v272 = vld [vmem:[%s1 + $0x6e8] sm:$0xff]
  %v273 = vld [vmem:[%s1 + $0x6f0] sm:$0xff]
  %v274 = vld [vmem:[%s1 + $0x6f8] sm:$0xff]
  %v275 = vld [vmem:[%s1 + $0x700] sm:$0xff]
  %v276 = vld [vmem:[%s1 + $0x708] sm:$0xff]
  %v277 = vld [vmem:[%s1 + $0x710] sm:$0xff]
  %v278 = vld [vmem:[%s1 + $0x718] sm:$0xff]
  %v279 = vld [vmem:[%s1 + $0x720] sm:$0xff]
  %v280 = vld [vmem:[%s1 + $0x728] sm:$0xff]
  %v281 = vld [vmem:[%s1 + $0x730] sm:$0xff]
  %v282 = vld [vmem:[%s1 + $0x738] sm:$0xff]
  %v283 = vld [vmem:[%s1 + $0x740] sm:$0xff]
  %v284 = vld [vmem:[%s1 + $0x748] sm:$0xff]
  %v285 = vld [vmem:[%s1 + $0x750] sm:$0xff]
  %v286 = vld [vmem:[%s1 + $0x758] sm:$0xff]
  %v287 = vld [vmem:[%s1 + $0x760] sm:$0xff]
  %v288 = vld [vmem:[%s1 + $0x768] sm:$0xff]
  %v289 = vld [vmem:[%s1 + $0x770] sm:$0xff]
  %v290 = vld [vmem:[%s1 + $0x778] sm:$0xff]
  %v291 = vld [vmem:[%s1 + $0x780] sm:$0xff]
  %v292 = vld [vmem:[%s1 + $0x788] sm:$0xff]
  %v293 = vld [vmem:[%s1 + $0x790] sm:$0xff]
  %v294 = vld [vmem:[%s1 + $0x798] sm:$0xff]
  %v295 = vld [vmem:[%s1 + $0x7a0] sm:$0xff]
  %v296 = vld [vmem:[%s1 + $0x7a8] sm:$0xff]
  %v297 = vld [vmem:[%s1 + $0x7b0] sm:$0xff]
  %v298 = vld [vmem:[%s1 + $0x7b8] sm:$0xff]
  %v299 = vld [vmem:[%s1 + $0x7c0] sm:$0xff]
  %v300 = vld [vmem:[%s1 + $0x7c8] sm:$0xff]
  %v301 = vld [vmem:[%s1 + $0x7d0] sm:$0xff]
  %v302 = vld [vmem:[%s1 + $0x7d8] sm:$0xff]
  %v303 = vld [vmem:[%s1 + $0x7e0] sm:$0xff]
  %v304 = vld [vmem:[%s1 + $0x7e8] sm:$0xff]
  %v305 = vld [vmem:[%s1 + $0x7f0] sm:$0xff]
  %v306 = vld [vmem:[%s1 + $0x7f8] sm:$0xff]
  %v307 = vld [vmem:[%s1 + $0x800] sm:$0xff]
  %v308 = vld [vmem:[%s1 + $0x808] sm:$0xff]
  %v309 = vld [vmem:[%s1 + $0x810] sm:$0xff]
  %v310 = vld [vmem:[%s1 + $0x818] sm:$0xff]
  %v311 = vld [vmem:[%s1 + $0x820] sm:$0xff]
  %v312 = vld [vmem:[%s1 + $0x828] sm:$0xff]
  %v313 = vld [vmem:[%s1 + $0x830] sm:$0xff]
  %v314 = vld [vmem:[%s1 + $0x838] sm:$0xff]
  %v315 = vld [vmem:[%s1 + $0x840] sm:$0xff]
  %v316 = vld [vmem:[%s1 + $0x848] sm:$0xff]
  %v317 = vld [vmem:[%s1 + $0x850] sm:$0xff]
  %v318 = vld [vmem:[%s1 + $0x858] sm:$0xff]
  %v319 = vld [vmem:[%s1 + $0x860] sm:$0xff]
  %v320 = vld [vmem:[%s1 + $0x868] sm:$0xff]
  %v321 = vld [vmem:[%s1 + $0x870] sm:$0xff]
  %v322 = vld [vmem:[%s1 + $0x878] sm:$0xff]
  %v323 = vld [vmem:[%s1 + $0x880] sm:$0xff]
  %v324 = vld [vmem:[%s1 + $0x888] sm:$0xff]
  %v325 = vld [vmem:[%s1 + $0x890] sm:$0xff]
  %v326 = vld [vmem:[%s1 + $0x898] sm:$0xff]
  %v327 = vld [vmem:[%s1 + $0x8a0] sm:$0xff]
  %v328 = vld [vmem:[%s1 + $0x8a8] sm:$0xff]
  %v329 = vld [vmem:[%s1 + $0x8b0] sm:$0xff]
  %v330 = vld [vmem:[%s1 + $0x8b8] sm:$0xff]
  %v331 = vld [vmem:[%s1 + $0x8c0] sm:$0xff]
  %v332 = vld [vmem:[%s1 + $0x8c8] sm:$0xff]
  %v333 = vld [vmem:[%s1 + $0x8d0] sm:$0xff]
  %v334 = vld [vmem:[%s1 + $0x8d8] sm:$0xff]
  %v335 = vld [vmem:[%s1 + $0x8e0] sm:$0xff]
  %v336 = vld [vmem:[%s1 + $0x8e8] sm:$0xff]
  %v337 = vld [vmem:[%s1 + $0x8f0] sm:$0xff]
  %v338 = vld [vmem:[%s1 + $0x8f8] sm:$0xff]
  %v339 = vld [vmem:[%s1 + $0x900] sm:$0xff]
  %v340 = vld [vmem:[%s1 + $0x908] sm:$0xff]
  %v341 = vld [vmem:[%s1 + $0x910] sm:$0xff]
  %v342 = vld [vmem:[%s1 + $0x918] sm:$0xff]
  %v343 = vld [vmem:[%s1 + $0x920] sm:$0xff]
  %v344 = vld [vmem:[%s1 + $0x928] sm:$0xff]
  %v345 = vld [vmem:[%s1 + $0x930] sm:$0xff]
  %v346 = vld [vmem:[%s1 + $0x938] sm:$0xff]
  %v347 = vld [vmem:[%s1 + $0x940] sm:$0xff]
  %v348 = vld [vmem:[%s1 + $0x948] sm:$0xff]
  %v349 = vld [vmem:[%s1 + $0x950] sm:$0xff]
  %v350 = vld [vmem:[%s1 + $0x958] sm:$0xff]
  %v351 = vld [vmem:[%s1 + $0x960] sm:$0xff]
  %v352 = vld [vmem:[%s1 + $0x968] sm:$0xff]
  %v353 = vld [vmem:[%s1 + $0x970] sm:$0xff]
  %v354 = vld [vmem:[%s1 + $0x978] sm:$0xff]
  %v355 = vld [vmem:[%s1 + $0x980] sm:$0xff]
  %v356 = vld [vmem:[%s1 + $0x988] sm:$0xff]
  %v357 = vld [vmem:[%s1 + $0x990] sm:$0xff]
  %v358 = vld [vmem:[%s1 + $0x998] sm:$0xff]
  %v359 = vld [vmem:[%s1 + $0x9a0] sm:$0xff]
  %v360 = vld [vmem:[%s1 + $0x9a8] sm:$0xff]
  %v361 = vld [vmem:[%s1 + $0x9b0] sm:$0xff]
  %v362 = vld [vmem:[%s1 + $0x9b8] sm:$0xff]
  %v363 = vld [vmem:[%s1 + $0x9c0] sm:$0xff]
  %v364 = vld [vmem:[%s1 + $0x9c8] sm:$0xff]
  %v365 = vld [vmem:[%s1 + $0x9d0] sm:$0xff]
  %v366 = vld [vmem:[%s1 + $0x9d8] sm:$0xff]
  %v367 = vld [vmem:[%s1 + $0x9e0] sm:$0xff]
  %v368 = vld [vmem:[%s1 + $0x9e8] sm:$0xff]
  %v369 = vld [vmem:[%s1 + $0x9f0] sm:$0xff]
  %v370 = vld [vmem:[%s1 + $0x9f8] sm:$0xff]
  %v371 = vld [vmem:[%s1 + $0xa00] sm:$0xff]
  %v372 = vld [vmem:[%s1 + $0xa08] sm:$0xff]
  %v373 = vld [vmem:[%s1 + $0xa10] sm:$0xff]
  %v374 = vld [vmem:[%s1 + $0xa18] sm:$0xff]
  %v375 = vld [vmem:[%s1 + $0xa20] sm:$0xff]
  %v376 = vld [vmem:[%s1 + $0xa28] sm:$0xff]
  %v377 = vld [vmem:[%s1 + $0xa30] sm:$0xff]
  %v378 = vld [vmem:[%s1 + $0xa38] sm:$0xff]
  %v379 = vld [vmem:[%s1 + $0xa40] sm:$0xff]
  %v380 = vld [vmem:[%s1 + $0xa48] sm:$0xff]
  %v381 = vld [vmem:[%s1 + $0xa50] sm:$0xff]
  %v382 = vld [vmem:[%s1 + $0xa58] sm:$0xff]
  %v383 = vld [vmem:[%s1 + $0xa60] sm:$0xff]
  %v384 = vld [vmem:[%s1 + $0xa68] sm:$0xff]
  %v385 = vld [vmem:[%s1 + $0xa70] sm:$0xff]
  %v386 = vld [vmem:[%s1 + $0xa78] sm:$0xff]
  %v387 = vld [vmem:[%s1 + $0xa80] sm:$0xff]
  %v388 = vld [vmem:[%s1 + $0xa88] sm:$0xff]
  %v389 = vld [vmem:[%s1 + $0xa90] sm:$0xff]
  %v390 = vld [vmem:[%s1 + $0xa98] sm:$0xff]
  %v391 = vld [vmem:[%s1 + $0xaa0] sm:$0xff]
  %v392 = vld [vmem:[%s1 + $0xaa8] sm:$0xff]
  %v393 = vld [vmem:[%s1 + $0xab0] sm:$0xff]
  %v394 = vld [vmem:[%s1 + $0xab8] sm:$0xff]
  %v395 = vld [vmem:[%s1 + $0xac0] sm:$0xff]
  %v396 = vld [vmem:[%s1 + $0xac8] sm:$0xff]
  %v397 = vld [vmem:[%s1 + $0xad0] sm:$0xff]
  %v398 = vld [vmem:[%s1 + $0xad8] sm:$0xff]
  %v399 = vld [vmem:[%s1 + $0xae0] sm:$0xff]
  %v400 = vld [vmem:[%s1 + $0xae8] sm:$0xff]
  %v401 = vld [vmem:[%s1 + $0xaf0] sm:$0xff]
  %v402 = vld [vmem:[%s1 + $0xaf8] sm:$0xff]
  %v403 = vld [vmem:[%s1 + $0xb00] sm:$0xff]
  %v404 = vld [vmem:[%s1 + $0xb08] sm:$0xff]
  %v405 = vld [vmem:[%s1 + $0xb10] sm:$0xff]
  %v406 = vld [vmem:[%s1 + $0xb18] sm:$0xff]
  %v407 = vld [vmem:[%s1 + $0xb20] sm:$0xff]
  %v408 = vld [vmem:[%s1 + $0xb28] sm:$0xff]
  %v409 = vld [vmem:[%s1 + $0xb30] sm:$0xff]
  %v410 = vld [vmem:[%s1 + $0xb38] sm:$0xff]
  %v411 = vld [vmem:[%s1 + $0xb40] sm:$0xff]
  %v412 = vld [vmem:[%s1 + $0xb48] sm:$0xff]
  %v413 = vld [vmem:[%s1 + $0xb50] sm:$0xff]
  %v414 = vld [vmem:[%s1 + $0xb58] sm:$0xff]
  %v415 = vld [vmem:[%s1 + $0xb60] sm:$0xff]
  %v416 = vld [vmem:[%s1 + $0xb68] sm:$0xff]
  %v417 = vld [vmem:[%s1 + $0xb70] sm:$0xff]
  %v418 = vld [vmem:[%s1 + $0xb78] sm:$0xff]
  %v419 = vld [vmem:[%s1 + $0xb80] sm:$0xff]
  %v420 = vld [vmem:[%s1 + $0xb88] sm:$0xff]
  %v421 = vld [vmem:[%s1 + $0xb90] sm:$0xff]
  %v422 = vld [vmem:[%s1 + $0xb98] sm:$0xff]
  %v423 = vld [vmem:[%s1 + $0xba0] sm:$0xff]
  %v424 = vld [vmem:[%s1 + $0xba8] sm:$0xff]
  %v425 = vld [vmem:[%s1 + $0xbb0] sm:$0xff]
  %v426 = vld [vmem:[%s1 + $0xbb8] sm:$0xff]
  %v427 = vld [vmem:[%s1 + $0xbc0] sm:$0xff]
  %v428 = vld [vmem:[%s1 + $0xbc8] sm:$0xff]
  %v429 = vld [vmem:[%s1 + $0xbd0] sm:$0xff]
  %v430 = vld [vmem:[%s1 + $0xbd8] sm:$0xff]
  %v431 = vld [vmem:[%s1 + $0xbe0] sm:$0xff]
  %v432 = vld [vmem:[%s1 + $0xbe8] sm:$0xff]
  %v433 = vld [vmem:[%s1 + $0xbf0] sm:$0xff]
  %v434 = vld [vmem:[%s1 + $0xbf8] sm:$0xff]
  %v435 = vld [vmem:[%s1 + $0xc00] sm:$0xff]
  %v436 = vld [vmem:[%s1 + $0xc08] sm:$0xff]
  %v437 = vld [vmem:[%s1 + $0xc10] sm:$0xff]
  %v438 = vld [vmem:[%s1 + $0xc18] sm:$0xff]
  %v439 = vld [vmem:[%s1 + $0xc20] sm:$0xff]
  %v440 = vld [vmem:[%s1 + $0xc28] sm:$0xff]
  %v441 = vld [vmem:[%s1 + $0xc30] sm:$0xff]
  %v442 = vld [vmem:[%s1 + $0xc38] sm:$0xff]
  %v443 = vld [vmem:[%s1 + $0xc40] sm:$0xff]
  %v444 = vld [vmem:[%s1 + $0xc48] sm:$0xff]
  %v445 = vld [vmem:[%s1 + $0xc50] sm:$0xff]
  %v446 = vld [vmem:[%s1 + $0xc58] sm:$0xff]
  %v447 = vld [vmem:[%s1 + $0xc60] sm:$0xff]
  %v448 = vld [vmem:[%s1 + $0xc68] sm:$0xff]
  %v449 = vld [vmem:[%s1 + $0xc70] sm:$0xff]
  %v450 = vld [vmem:[%s1 + $0xc78] sm:$0xff]
  %v451 = vld [vmem:[%s2] sm:$0x1]
  %v453 = vperm.slane %v451, 0
  %455 = vmatpush.msra.mxu0 %v66
  %456 = vmatpush.msra.mxu0 %v65
  %457 = vmatpush.msra.mxu0 %v64
  %458 = vmatpush.msra.mxu0 %v63
  %459 = vmatpush.msra.mxu0 %v62
  %460 = vmatpush.msra.mxu0 %v61
  %461 = vmatpush.msra.mxu0 %v60
  %462 = vmatpush.msra.mxu0 %v59
  %463 = vmatpush.msra.mxu0 %v58
  %464 = vmatpush.msra.mxu0 %v57
  %465 = vmatpush.msra.mxu0 %v56
  %466 = vmatpush.msra.mxu0 %v55
  %467 = vmatpush.msra.mxu0 %v54
  %468 = vmatpush.msra.mxu0 %v53
  %469 = vmatpush.msra.mxu0 %v52
  %470 = vmatpush.msra.mxu0 %v51
  %471 = vmatmul.f32.gmra.mxu0 %v26
  %v472 = vpop.f32.mrf.mxu0
  %v473 = vadd.f32 %v453, %v472
  %474 = vdwg.mxu0
  %475 = vmatpush.msra.mxu0 %v82
  %476 = vmatpush.msra.mxu0 %v81
  %477 = vmatpush.msra.mxu0 %v80
  %478 = vmatpush.msra.mxu0 %v79
  %479 = vmatpush.msra.mxu0 %v78
  %480 = vmatpush.msra.mxu0 %v77
  %481 = vmatpush.msra.mxu0 %v76
  %482 = vmatpush.msra.mxu0 %v75
  %483 = vmatpush.msra.mxu0 %v74
  %484 = vmatpush.msra.mxu0 %v73
  %485 = vmatpush.msra.mxu0 %v72
  %486 = vmatpush.msra.mxu0 %v71
  %487 = vmatpush.msra.mxu0 %v70
  %488 = vmatpush.msra.mxu0 %v69
  %489 = vmatpush.msra.mxu0 %v68
  %490 = vmatpush.msra.mxu0 %v67
  %491 = vmatmul.f32.gmra.mxu0 %v27
  %v492 = vpop.f32.mrf.mxu0
  %v493 = vadd.f32 %v473, %v492
  %494 = vdwg.mxu0
  %495 = vmatpush.msra.mxu0 %v98
  %496 = vmatpush.msra.mxu0 %v97
  %497 = vmatpush.msra.mxu0 %v96
  %498 = vmatpush.msra.mxu0 %v95
  %499 = vmatpush.msra.mxu0 %v94
  %500 = vmatpush.msra.mxu0 %v93
  %501 = vmatpush.msra.mxu0 %v92
  %502 = vmatpush.msra.mxu0 %v91
  %503 = vmatpush.msra.mxu0 %v90
  %504 = vmatpush.msra.mxu0 %v89
  %505 = vmatpush.msra.mxu0 %v88
  %506 = vmatpush.msra.mxu0 %v87
  %507 = vmatpush.msra.mxu0 %v86
  %508 = vmatpush.msra.mxu0 %v85
  %509 = vmatpush.msra.mxu0 %v84
  %510 = vmatpush.msra.mxu0 %v83
  %511 = vmatmul.f32.gmra.mxu0 %v28
  %v512 = vpop.f32.mrf.mxu0
  %v513 = vadd.f32 %v493, %v512
  %514 = vdwg.mxu0
  %515 = vmatpush.msra.mxu0 %v114
  %516 = vmatpush.msra.mxu0 %v113
  %517 = vmatpush.msra.mxu0 %v112
  %518 = vmatpush.msra.mxu0 %v111
  %519 = vmatpush.msra.mxu0 %v110
  %520 = vmatpush.msra.mxu0 %v109
  %521 = vmatpush.msra.mxu0 %v108
  %522 = vmatpush.msra.mxu0 %v107
  %523 = vmatpush.msra.mxu0 %v106
  %524 = vmatpush.msra.mxu0 %v105
  %525 = vmatpush.msra.mxu0 %v104
  %526 = vmatpush.msra.mxu0 %v103
  %527 = vmatpush.msra.mxu0 %v102
  %528 = vmatpush.msra.mxu0 %v101
  %529 = vmatpush.msra.mxu0 %v100
  %530 = vmatpush.msra.mxu0 %v99
  %531 = vmatmul.f32.gmra.mxu0 %v29
  %v532 = vpop.f32.mrf.mxu0
  %v533 = vadd.f32 %v513, %v532
  %534 = vdwg.mxu0
  %535 = vmatpush.msra.mxu0 %v130
  %536 = vmatpush.msra.mxu0 %v129
  %537 = vmatpush.msra.mxu0 %v128
  %538 = vmatpush.msra.mxu0 %v127
  %539 = vmatpush.msra.mxu0 %v126
  %540 = vmatpush.msra.mxu0 %v125
  %541 = vmatpush.msra.mxu0 %v124
  %542 = vmatpush.msra.mxu0 %v123
  %543 = vmatpush.msra.mxu0 %v122
  %544 = vmatpush.msra.mxu0 %v121
  %545 = vmatpush.msra.mxu0 %v120
  %546 = vmatpush.msra.mxu0 %v119
  %547 = vmatpush.msra.mxu0 %v118
  %548 = vmatpush.msra.mxu0 %v117
  %549 = vmatpush.msra.mxu0 %v116
  %550 = vmatpush.msra.mxu0 %v115
  %551 = vmatmul.f32.gmra.mxu0 %v30
  %v552 = vpop.f32.mrf.mxu0
  %v553 = vadd.f32 %v533, %v552
  %554 = vdwg.mxu0
  %555 = vmatpush.msra.mxu0 %v146
  %556 = vmatpush.msra.mxu0 %v145
  %557 = vmatpush.msra.mxu0 %v144
  %558 = vmatpush.msra.mxu0 %v143
  %559 = vmatpush.msra.mxu0 %v142
  %560 = vmatpush.msra.mxu0 %v141
  %561 = vmatpush.msra.mxu0 %v140
  %562 = vmatpush.msra.mxu0 %v139
  %563 = vmatpush.msra.mxu0 %v138
  %564 = vmatpush.msra.mxu0 %v137
  %565 = vmatpush.msra.mxu0 %v136
  %566 = vmatpush.msra.mxu0 %v135
  %567 = vmatpush.msra.mxu0 %v134
  %568 = vmatpush.msra.mxu0 %v133
  %569 = vmatpush.msra.mxu0 %v132
  %570 = vmatpush.msra.mxu0 %v131
  %571 = vmatmul.f32.gmra.mxu0 %v31
  %v572 = vpop.f32.mrf.mxu0
  %v573 = vadd.f32 %v553, %v572
  %574 = vdwg.mxu0
  %575 = vmatpush.msra.mxu0 %v162
  %576 = vmatpush.msra.mxu0 %v161
  %577 = vmatpush.msra.mxu0 %v160
  %578 = vmatpush.msra.mxu0 %v159
  %579 = vmatpush.msra.mxu0 %v158
  %580 = vmatpush.msra.mxu0 %v157
  %581 = vmatpush.msra.mxu0 %v156
  %582 = vmatpush.msra.mxu0 %v155
  %583 = vmatpush.msra.mxu0 %v154
  %584 = vmatpush.msra.mxu0 %v153
  %585 = vmatpush.msra.mxu0 %v152
  %586 = vmatpush.msra.mxu0 %v151
  %587 = vmatpush.msra.mxu0 %v150
  %588 = vmatpush.msra.mxu0 %v149
  %589 = vmatpush.msra.mxu0 %v148
  %590 = vmatpush.msra.mxu0 %v147
  %591 = vmatmul.f32.gmra.mxu0 %v32
  %v592 = vpop.f32.mrf.mxu0
  %v593 = vadd.f32 %v573, %v592
  %594 = vdwg.mxu0
  %595 = vmatpush.msra.mxu0 %v178
  %596 = vmatpush.msra.mxu0 %v177
  %597 = vmatpush.msra.mxu0 %v176
  %598 = vmatpush.msra.mxu0 %v175
  %599 = vmatpush.msra.mxu0 %v174
  %600 = vmatpush.msra.mxu0 %v173
  %601 = vmatpush.msra.mxu0 %v172
  %602 = vmatpush.msra.mxu0 %v171
  %603 = vmatpush.msra.mxu0 %v170
  %604 = vmatpush.msra.mxu0 %v169
  %605 = vmatpush.msra.mxu0 %v168
  %606 = vmatpush.msra.mxu0 %v167
  %607 = vmatpush.msra.mxu0 %v166
  %608 = vmatpush.msra.mxu0 %v165
  %609 = vmatpush.msra.mxu0 %v164
  %610 = vmatpush.msra.mxu0 %v163
  %611 = vmatmul.f32.gmra.mxu0 %v33
  %v612 = vpop.f32.mrf.mxu0
  %v613 = vadd.f32 %v593, %v612
  %614 = vdwg.mxu0
  %615 = vmatpush.msra.mxu0 %v194
  %616 = vmatpush.msra.mxu0 %v193
  %617 = vmatpush.msra.mxu0 %v192
  %618 = vmatpush.msra.mxu0 %v191
  %619 = vmatpush.msra.mxu0 %v190
  %620 = vmatpush.msra.mxu0 %v189
  %621 = vmatpush.msra.mxu0 %v188
  %622 = vmatpush.msra.mxu0 %v187
  %623 = vmatpush.msra.mxu0 %v186
  %624 = vmatpush.msra.mxu0 %v185
  %625 = vmatpush.msra.mxu0 %v184
  %626 = vmatpush.msra.mxu0 %v183
  %627 = vmatpush.msra.mxu0 %v182
  %628 = vmatpush.msra.mxu0 %v181
  %629 = vmatpush.msra.mxu0 %v180
  %630 = vmatpush.msra.mxu0 %v179
  %631 = vmatmul.f32.gmra.mxu0 %v34
  %v632 = vpop.f32.mrf.mxu0
  %v633 = vadd.f32 %v613, %v632
  %634 = vdwg.mxu0
  %635 = vmatpush.msra.mxu0 %v210
  %636 = vmatpush.msra.mxu0 %v209
  %637 = vmatpush.msra.mxu0 %v208
  %638 = vmatpush.msra.mxu0 %v207
  %639 = vmatpush.msra.mxu0 %v206
  %640 = vmatpush.msra.mxu0 %v205
  %641 = vmatpush.msra.mxu0 %v204
  %642 = vmatpush.msra.mxu0 %v203
  %643 = vmatpush.msra.mxu0 %v202
  %644 = vmatpush.msra.mxu0 %v201
  %645 = vmatpush.msra.mxu0 %v200
  %646 = vmatpush.msra.mxu0 %v199
  %647 = vmatpush.msra.mxu0 %v198
  %648 = vmatpush.msra.mxu0 %v197
  %649 = vmatpush.msra.mxu0 %v196
  %650 = vmatpush.msra.mxu0 %v195
  %651 = vmatmul.f32.gmra.mxu0 %v35
  %v652 = vpop.f32.mrf.mxu0
  %v653 = vadd.f32 %v633, %v652
  %654 = vdwg.mxu0
  %655 = vmatpush.msra.mxu0 %v226
  %656 = vmatpush.msra.mxu0 %v225
  %657 = vmatpush.msra.mxu0 %v224
  %658 = vmatpush.msra.mxu0 %v223
  %659 = vmatpush.msra.mxu0 %v222
  %660 = vmatpush.msra.mxu0 %v221
  %661 = vmatpush.msra.mxu0 %v220
  %662 = vmatpush.msra.mxu0 %v219
  %663 = vmatpush.msra.mxu0 %v218
  %664 = vmatpush.msra.mxu0 %v217
  %665 = vmatpush.msra.mxu0 %v216
  %666 = vmatpush.msra.mxu0 %v215
  %667 = vmatpush.msra.mxu0 %v214
  %668 = vmatpush.msra.mxu0 %v213
  %669 = vmatpush.msra.mxu0 %v212
  %670 = vmatpush.msra.mxu0 %v211
  %671 = vmatmul.f32.gmra.mxu0 %v36
  %v672 = vpop.f32.mrf.mxu0
  %v673 = vadd.f32 %v653, %v672
  %674 = vdwg.mxu0
  %675 = vmatpush.msra.mxu0 %v242
  %676 = vmatpush.msra.mxu0 %v241
  %677 = vmatpush.msra.mxu0 %v240
  %678 = vmatpush.msra.mxu0 %v239
  %679 = vmatpush.msra.mxu0 %v238
  %680 = vmatpush.msra.mxu0 %v237
  %681 = vmatpush.msra.mxu0 %v236
  %682 = vmatpush.msra.mxu0 %v235
  %683 = vmatpush.msra.mxu0 %v234
  %684 = vmatpush.msra.mxu0 %v233
  %685 = vmatpush.msra.mxu0 %v232
  %686 = vmatpush.msra.mxu0 %v231
  %687 = vmatpush.msra.mxu0 %v230
  %688 = vmatpush.msra.mxu0 %v229
  %689 = vmatpush.msra.mxu0 %v228
  %690 = vmatpush.msra.mxu0 %v227
  %691 = vmatmul.f32.gmra.mxu0 %v37
  %v692 = vpop.f32.mrf.mxu0
  %v693 = vadd.f32 %v673, %v692
  %694 = vdwg.mxu0
  %695 = vmatpush.msra.mxu0 %v258
  %696 = vmatpush.msra.mxu0 %v257
  %697 = vmatpush.msra.mxu0 %v256
  %698 = vmatpush.msra.mxu0 %v255
  %699 = vmatpush.msra.mxu0 %v254
  %700 = vmatpush.msra.mxu0 %v253
  %701 = vmatpush.msra.mxu0 %v252
  %702 = vmatpush.msra.mxu0 %v251
  %703 = vmatpush.msra.mxu0 %v250
  %704 = vmatpush.msra.mxu0 %v249
  %705 = vmatpush.msra.mxu0 %v248
  %706 = vmatpush.msra.mxu0 %v247
  %707 = vmatpush.msra.mxu0 %v246
  %708 = vmatpush.msra.mxu0 %v245
  %709 = vmatpush.msra.mxu0 %v244
  %710 = vmatpush.msra.mxu0 %v243
  %711 = vmatmul.f32.gmra.mxu0 %v38
  %v712 = vpop.f32.mrf.mxu0
  %v713 = vadd.f32 %v693, %v712
  %714 = vdwg.mxu0
  %715 = vmatpush.msra.mxu0 %v274
  %716 = vmatpush.msra.mxu0 %v273
  %717 = vmatpush.msra.mxu0 %v272
  %718 = vmatpush.msra.mxu0 %v271
  %719 = vmatpush.msra.mxu0 %v270
  %720 = vmatpush.msra.mxu0 %v269
  %721 = vmatpush.msra.mxu0 %v268
  %722 = vmatpush.msra.mxu0 %v267
  %723 = vmatpush.msra.mxu0 %v266
  %724 = vmatpush.msra.mxu0 %v265
  %725 = vmatpush.msra.mxu0 %v264
  %726 = vmatpush.msra.mxu0 %v263
  %727 = vmatpush.msra.mxu0 %v262
  %728 = vmatpush.msra.mxu0 %v261
  %729 = vmatpush.msra.mxu0 %v260
  %730 = vmatpush.msra.mxu0 %v259
  %731 = vmatmul.f32.gmra.mxu0 %v39
  %v732 = vpop.f32.mrf.mxu0
  %v733 = vadd.f32 %v713, %v732
  %734 = vdwg.mxu0
  %735 = vmatpush.msra.mxu0 %v290
  %736 = vmatpush.msra.mxu0 %v289
  %737 = vmatpush.msra.mxu0 %v288
  %738 = vmatpush.msra.mxu0 %v287
  %739 = vmatpush.msra.mxu0 %v286
  %740 = vmatpush.msra.mxu0 %v285
  %741 = vmatpush.msra.mxu0 %v284
  %742 = vmatpush.msra.mxu0 %v283
  %743 = vmatpush.msra.mxu0 %v282
  %744 = vmatpush.msra.mxu0 %v281
  %745 = vmatpush.msra.mxu0 %v280
  %746 = vmatpush.msra.mxu0 %v279
  %747 = vmatpush.msra.mxu0 %v278
  %748 = vmatpush.msra.mxu0 %v277
  %749 = vmatpush.msra.mxu0 %v276
  %750 = vmatpush.msra.mxu0 %v275
  %751 = vmatmul.f32.gmra.mxu0 %v40
  %v752 = vpop.f32.mrf.mxu0
  %v753 = vadd.f32 %v733, %v752
  %754 = vdwg.mxu0
  %755 = vmatpush.msra.mxu0 %v306
  %756 = vmatpush.msra.mxu0 %v305
  %757 = vmatpush.msra.mxu0 %v304
  %758 = vmatpush.msra.mxu0 %v303
  %759 = vmatpush.msra.mxu0 %v302
  %760 = vmatpush.msra.mxu0 %v301
  %761 = vmatpush.msra.mxu0 %v300
  %762 = vmatpush.msra.mxu0 %v299
  %763 = vmatpush.msra.mxu0 %v298
  %764 = vmatpush.msra.mxu0 %v297
  %765 = vmatpush.msra.mxu0 %v296
  %766 = vmatpush.msra.mxu0 %v295
  %767 = vmatpush.msra.mxu0 %v294
  %768 = vmatpush.msra.mxu0 %v293
  %769 = vmatpush.msra.mxu0 %v292
  %770 = vmatpush.msra.mxu0 %v291
  %771 = vmatmul.f32.gmra.mxu0 %v41
  %v772 = vpop.f32.mrf.mxu0
  %v773 = vadd.f32 %v753, %v772
  %774 = vdwg.mxu0
  %775 = vmatpush.msra.mxu0 %v322
  %776 = vmatpush.msra.mxu0 %v321
  %777 = vmatpush.msra.mxu0 %v320
  %778 = vmatpush.msra.mxu0 %v319
  %779 = vmatpush.msra.mxu0 %v318
  %780 = vmatpush.msra.mxu0 %v317
  %781 = vmatpush.msra.mxu0 %v316
  %782 = vmatpush.msra.mxu0 %v315
  %783 = vmatpush.msra.mxu0 %v314
  %784 = vmatpush.msra.mxu0 %v313
  %785 = vmatpush.msra.mxu0 %v312
  %786 = vmatpush.msra.mxu0 %v311
  %787 = vmatpush.msra.mxu0 %v310
  %788 = vmatpush.msra.mxu0 %v309
  %789 = vmatpush.msra.mxu0 %v308
  %790 = vmatpush.msra.mxu0 %v307
  %791 = vmatmul.f32.gmra.mxu0 %v42
  %v792 = vpop.f32.mrf.mxu0
  %v793 = vadd.f32 %v773, %v792
  %794 = vdwg.mxu0
  %795 = vmatpush.msra.mxu0 %v338
  %796 = vmatpush.msra.mxu0 %v337
  %797 = vmatpush.msra.mxu0 %v336
  %798 = vmatpush.msra.mxu0 %v335
  %799 = vmatpush.msra.mxu0 %v334
  %800 = vmatpush.msra.mxu0 %v333
  %801 = vmatpush.msra.mxu0 %v332
  %802 = vmatpush.msra.mxu0 %v331
  %803 = vmatpush.msra.mxu0 %v330
  %804 = vmatpush.msra.mxu0 %v329
  %805 = vmatpush.msra.mxu0 %v328
  %806 = vmatpush.msra.mxu0 %v327
  %807 = vmatpush.msra.mxu0 %v326
  %808 = vmatpush.msra.mxu0 %v325
  %809 = vmatpush.msra.mxu0 %v324
  %810 = vmatpush.msra.mxu0 %v323
  %811 = vmatmul.f32.gmra.mxu0 %v43
  %v812 = vpop.f32.mrf.mxu0
  %v813 = vadd.f32 %v793, %v812
  %814 = vdwg.mxu0
  %815 = vmatpush.msra.mxu0 %v354
  %816 = vmatpush.msra.mxu0 %v353
  %817 = vmatpush.msra.mxu0 %v352
  %818 = vmatpush.msra.mxu0 %v351
  %819 = vmatpush.msra.mxu0 %v350
  %820 = vmatpush.msra.mxu0 %v349
  %821 = vmatpush.msra.mxu0 %v348
  %822 = vmatpush.msra.mxu0 %v347
  %823 = vmatpush.msra.mxu0 %v346
  %824 = vmatpush.msra.mxu0 %v345
  %825 = vmatpush.msra.mxu0 %v344
  %826 = vmatpush.msra.mxu0 %v343
  %827 = vmatpush.msra.mxu0 %v342
  %828 = vmatpush.msra.mxu0 %v341
  %829 = vmatpush.msra.mxu0 %v340
  %830 = vmatpush.msra.mxu0 %v339
  %831 = vmatmul.f32.gmra.mxu0 %v44
  %v832 = vpop.f32.mrf.mxu0
  %v833 = vadd.f32 %v813, %v832
  %834 = vdwg.mxu0
  %835 = vmatpush.msra.mxu0 %v370
  %836 = vmatpush.msra.mxu0 %v369
  %837 = vmatpush.msra.mxu0 %v368
  %838 = vmatpush.msra.mxu0 %v367
  %839 = vmatpush.msra.mxu0 %v366
  %840 = vmatpush.msra.mxu0 %v365
  %841 = vmatpush.msra.mxu0 %v364
  %842 = vmatpush.msra.mxu0 %v363
  %843 = vmatpush.msra.mxu0 %v362
  %844 = vmatpush.msra.mxu0 %v361
  %845 = vmatpush.msra.mxu0 %v360
  %846 = vmatpush.msra.mxu0 %v359
  %847 = vmatpush.msra.mxu0 %v358
  %848 = vmatpush.msra.mxu0 %v357
  %849 = vmatpush.msra.mxu0 %v356
  %850 = vmatpush.msra.mxu0 %v355
  %851 = vmatmul.f32.gmra.mxu0 %v45
  %v852 = vpop.f32.mrf.mxu0
  %v853 = vadd.f32 %v833, %v852
  %854 = vdwg.mxu0
  %855 = vmatpush.msra.mxu0 %v386
  %856 = vmatpush.msra.mxu0 %v385
  %857 = vmatpush.msra.mxu0 %v384
  %858 = vmatpush.msra.mxu0 %v383
  %859 = vmatpush.msra.mxu0 %v382
  %860 = vmatpush.msra.mxu0 %v381
  %861 = vmatpush.msra.mxu0 %v380
  %862 = vmatpush.msra.mxu0 %v379
  %863 = vmatpush.msra.mxu0 %v378
  %864 = vmatpush.msra.mxu0 %v377
  %865 = vmatpush.msra.mxu0 %v376
  %866 = vmatpush.msra.mxu0 %v375
  %867 = vmatpush.msra.mxu0 %v374
  %868 = vmatpush.msra.mxu0 %v373
  %869 = vmatpush.msra.mxu0 %v372
  %870 = vmatpush.msra.mxu0 %v371
  %871 = vmatmul.f32.gmra.mxu0 %v46
  %v872 = vpop.f32.mrf.mxu0
  %v873 = vadd.f32 %v853, %v872
  %874 = vdwg.mxu0
  %875 = vmatpush.msra.mxu0 %v402
  %876 = vmatpush.msra.mxu0 %v401
  %877 = vmatpush.msra.mxu0 %v400
  %878 = vmatpush.msra.mxu0 %v399
  %879 = vmatpush.msra.mxu0 %v398
  %880 = vmatpush.msra.mxu0 %v397
  %881 = vmatpush.msra.mxu0 %v396
  %882 = vmatpush.msra.mxu0 %v395
  %883 = vmatpush.msra.mxu0 %v394
  %884 = vmatpush.msra.mxu0 %v393
  %885 = vmatpush.msra.mxu0 %v392
  %886 = vmatpush.msra.mxu0 %v391
  %887 = vmatpush.msra.mxu0 %v390
  %888 = vmatpush.msra.mxu0 %v389
  %889 = vmatpush.msra.mxu0 %v388
  %890 = vmatpush.msra.mxu0 %v387
  %891 = vmatmul.f32.gmra.mxu0 %v47
  %v892 = vpop.f32.mrf.mxu0
  %v893 = vadd.f32 %v873, %v892
  %894 = vdwg.mxu0
  %895 = vmatpush.msra.mxu0 %v418
  %896 = vmatpush.msra.mxu0 %v417
  %897 = vmatpush.msra.mxu0 %v416
  %898 = vmatpush.msra.mxu0 %v415
  %899 = vmatpush.msra.mxu0 %v414
  %900 = vmatpush.msra.mxu0 %v413
  %901 = vmatpush.msra.mxu0 %v412
  %902 = vmatpush.msra.mxu0 %v411
  %903 = vmatpush.msra.mxu0 %v410
  %904 = vmatpush.msra.mxu0 %v409
  %905 = vmatpush.msra.mxu0 %v408
  %906 = vmatpush.msra.mxu0 %v407
  %907 = vmatpush.msra.mxu0 %v406
  %908 = vmatpush.msra.mxu0 %v405
  %909 = vmatpush.msra.mxu0 %v404
  %910 = vmatpush.msra.mxu0 %v403
  %911 = vmatmul.f32.gmra.mxu0 %v48
  %v912 = vpop.f32.mrf.mxu0
  %v913 = vadd.f32 %v893, %v912
  %914 = vdwg.mxu0
  %915 = vmatpush.msra.mxu0 %v434
  %916 = vmatpush.msra.mxu0 %v433
  %917 = vmatpush.msra.mxu0 %v432
  %918 = vmatpush.msra.mxu0 %v431
  %919 = vmatpush.msra.mxu0 %v430
  %920 = vmatpush.msra.mxu0 %v429
  %921 = vmatpush.msra.mxu0 %v428
  %922 = vmatpush.msra.mxu0 %v427
  %923 = vmatpush.msra.mxu0 %v426
  %924 = vmatpush.msra.mxu0 %v425
  %925 = vmatpush.msra.mxu0 %v424
  %926 = vmatpush.msra.mxu0 %v423
  %927 = vmatpush.msra.mxu0 %v422
  %928 = vmatpush.msra.mxu0 %v421
  %929 = vmatpush.msra.mxu0 %v420
  %930 = vmatpush.msra.mxu0 %v419
  %931 = vmatmul.f32.gmra.mxu0 %v49
  %v932 = vpop.f32.mrf.mxu0
  %v933 = vadd.f32 %v913, %v932
  %934 = vdwg.mxu0
  %935 = vmatpush.msra.mxu0 %v450
  %936 = vmatpush.msra.mxu0 %v449
  %937 = vmatpush.msra.mxu0 %v448
  %938 = vmatpush.msra.mxu0 %v447
  %939 = vmatpush.msra.mxu0 %v446
  %940 = vmatpush.msra.mxu0 %v445
  %941 = vmatpush.msra.mxu0 %v444
  %942 = vmatpush.msra.mxu0 %v443
  %943 = vmatpush.msra.mxu0 %v442
  %944 = vmatpush.msra.mxu0 %v441
  %945 = vmatpush.msra.mxu0 %v440
  %946 = vmatpush.msra.mxu0 %v439
  %947 = vmatpush.msra.mxu0 %v438
  %948 = vmatpush.msra.mxu0 %v437
  %949 = vmatpush.msra.mxu0 %v436
  %950 = vmatpush.msra.mxu0 %v435
  %951 = vmatmul.f32.gmra.mxu0 %v50
  %v952 = vpop.f32.mrf.mxu0
  %v953 = vadd.f32 %v933, %v952
  %954 = vdwg.mxu0
  %v955 = vmax.f32 %v953, 0.0
  %v956 = vld [vmem:[%s3] sm:$0xff]
  %v957 = vld [vmem:[%s3 + $0x8] sm:$0xff]
  %v958 = vld [vmem:[%s3 + $0x10] sm:$0xff]
  %v959 = vld [vmem:[%s3 + $0x18] sm:$0xff]
  %v960 = vld [vmem:[%s3 + $0x20] sm:$0xff]
  %v961 = vld [vmem:[%s3 + $0x28] sm:$0xff]
  %v962 = vld [vmem:[%s3 + $0x30] sm:$0xff]
  %v963 = vld [vmem:[%s3 + $0x38] sm:$0xff]
  %v964 = vld [vmem:[%s3 + $0x40] sm:$0xff]
  %v965 = vld [vmem:[%s3 + $0x48] sm:$0xff]
  %v966 = vld [vmem:[%s3 + $0x50] sm:$0xff]
  %v967 = vld [vmem:[%s3 + $0x58] sm:$0xff]
  %v968 = vld [vmem:[%s3 + $0x60] sm:$0xff]
  %v969 = vld [vmem:[%s3 + $0x68] sm:$0xff]
  %v970 = vld [vmem:[%s3 + $0x70] sm:$0xff]
  %v971 = vld [vmem:[%s3 + $0x78] sm:$0xff]
  %v972 = vld [vmem:[%s4] sm:$0x1]
  %v974 = vperm.slane %v972, 0
  %976 = vmatpush.msra.mxu0 %v971
  %977 = vmatpush.msra.mxu0 %v970
  %978 = vmatpush.msra.mxu0 %v969
  %979 = vmatpush.msra.mxu0 %v968
  %980 = vmatpush.msra.mxu0 %v967
  %981 = vmatpush.msra.mxu0 %v966
  %982 = vmatpush.msra.mxu0 %v965
  %983 = vmatpush.msra.mxu0 %v964
  %984 = vmatpush.msra.mxu0 %v963
  %985 = vmatpush.msra.mxu0 %v962
  %986 = vmatpush.msra.mxu0 %v961
  %987 = vmatpush.msra.mxu0 %v960
  %988 = vmatpush.msra.mxu0 %v959
  %989 = vmatpush.msra.mxu0 %v958
  %990 = vmatpush.msra.mxu0 %v957
  %991 = vmatpush.msra.mxu0 %v956
  %992 = vmatmul.f32.gmra.mxu0 %v955
  %v993 = vpop.f32.mrf.mxu0
  %v994 = vadd.f32 %v974, %v993
  %995 = vdwg.mxu0
  %v996 = vmax.f32 %v994, 0.0
  %v997 = vld [vmem:[%s5] sm:$0xff]
  %v998 = vld [vmem:[%s5 + $0x8] sm:$0xff]
  %v999 = vld [vmem:[%s5 + $0x10] sm:$0xff]
  %v1000 = vld [vmem:[%s5 + $0x18] sm:$0xff]
  %v1001 = vld [vmem:[%s5 + $0x20] sm:$0xff]
  %v1002 = vld [vmem:[%s5 + $0x28] sm:$0xff]
  %v1003 = vld [vmem:[%s5 + $0x30] sm:$0xff]
  %v1004 = vld [vmem:[%s5 + $0x38] sm:$0xff]
  %v1005 = vld [vmem:[%s5 + $0x40] sm:$0xff]
  %v1006 = vld [vmem:[%s5 + $0x48] sm:$0xff]
  %v1007 = vld [vmem:[%s5 + $0x50] sm:$0xff]
  %v1008 = vld [vmem:[%s5 + $0x58] sm:$0xff]
  %v1009 = vld [vmem:[%s5 + $0x60] sm:$0xff]
  %v1010 = vld [vmem:[%s5 + $0x68] sm:$0xff]
  %v1011 = vld [vmem:[%s5 + $0x70] sm:$0xff]
  %v1012 = vld [vmem:[%s5 + $0x78] sm:$0xff]
  %v1013 = vld [vmem:[%s6] sm:$0x1]
  %v1015 = vperm.slane %v1013, 0
  %1017 = vmatpush.msra.mxu0 %v1012
  %1018 = vmatpush.msra.mxu0 %v1011
  %1019 = vmatpush.msra.mxu0 %v1010
  %1020 = vmatpush.msra.mxu0 %v1009
  %1021 = vmatpush.msra.mxu0 %v1008
  %1022 = vmatpush.msra.mxu0 %v1007
  %1023 = vmatpush.msra.mxu0 %v1006
  %1024 = vmatpush.msra.mxu0 %v1005
  %1025 = vmatpush.msra.mxu0 %v1004
  %1026 = vmatpush.msra.mxu0 %v1003
  %1027 = vmatpush.msra.mxu0 %v1002
  %1028 = vmatpush.msra.mxu0 %v1001
  %1029 = vmatpush.msra.mxu0 %v1000
  %1030 = vmatpush.msra.mxu0 %v999
  %1031 = vmatpush.msra.mxu0 %v998
  %1032 = vmatpush.msra.mxu0 %v997
  %1033 = vmatmul.f32.gmra.mxu0 %v996
  %v1034 = vpop.f32.mrf.mxu0
  %v1035 = vadd.f32 %v1015, %v1034
  %1036 = vdwg.mxu0
  %1037 = vst [vmem:[%s7] sm:$0xff] %v1035
  // Predicated region
  $region30: #{lenet5_forward.5} parent=0 // pred_check
    _
  $region31: #{lenet5_forward.5} parent=0 // pred_check_branch
    %1039 = sbr.rel (0) target = $region33
  $region32: #{lenet5_forward.5} parent=0 // pred_region
    _
  $region33: #{lenet5_forward.5} parent=0 // pred_fallthru
    _
  // Predicated region
  $region34: #{lenet5_forward.5} parent=0 // pred_check
    _
  $region35: #{lenet5_forward.5} parent=0 // pred_check_branch
    %1041 = sbr.rel (0) target = $region37
  $region36: #{lenet5_forward.5} parent=0 // pred_region
    _
  $region37: #{lenet5_forward.5} parent=0 // pred_fallthru
    _

</llo_original>
